<compile_context>
chip_gen: v5e
topology: v5e:2x2
jax: 0.10.0
libtpu: 0.0.40
codegen_flags: <defaults>
</compile_context>

<pallas_src>
import functools
import math

import jax
import jax.numpy as jnp
import numpy as np
from jax import lax
from jax.experimental import pallas as pl
from jax.experimental.pallas import tpu as pltpu


def _round_up(a, b):
    return -(-a // b) * b


def _make_freq_bands(max_freq_log2, n_freqs, log_sampling=True):
    if n_freqs <= 0:
        return tuple()
    if log_sampling:
        bands = 2.0 ** np.linspace(0.0, max_freq_log2, n_freqs)
    else:
        bands = np.linspace(2.0 ** 0.0, 2.0 ** max_freq_log2, n_freqs)
    return tuple(float(f) for f in bands.tolist())


def _build_constants(input_dim, freq_bands, include_input, k_pack):
    """Host-side numpy constants for the packed-lane layout.

    Packed input lane   i = k*D + d                       (k: row within group)
    Packed output lane  j = k*out_dim + p*D + d           (p: piece index)
    rep[i, j] = 1 iff input lane i feeds output lane j (0/1, bf16-exact).
    fvec[j]   = frequency multiplier for that lane (1 on the identity piece).
    phase[j]  = 0 on identity/sin lanes, pi/2 on cos lanes (cos = sin(.+pi/2)).
    """
    d_ = input_dim
    n_pieces = (1 if include_input else 0) + 2 * len(freq_bands)
    out_dim = n_pieces * d_
    lin = k_pack * d_
    lout = k_pack * out_dim

    j = np.arange(lout)
    rem = j % out_dim
    p = rem // d_
    src = (j // out_dim) * d_ + (rem % d_)

    rep = np.zeros((lin, lout), np.float32)
    rep[src, j] = 1.0

    fvec = np.ones((1, lout), np.float32)
    phase = np.zeros((1, lout), np.float32)
    base = 1 if include_input else 0
    for pi in range(base, n_pieces):
        f = freq_bands[(pi - base) // 2]
        is_cos = ((pi - base) % 2) == 1
        sel = (p == pi)
        fvec[:, sel] = np.float32(f)
        if is_cos:
            phase[:, sel] = np.float32(np.pi / 2.0)
    return rep, fvec, phase


def _embed_kernel(x_ref, rep_ref, fvec_ref, phase_ref, o_ref, *,
                  out_dim, input_dim, include_input):
    # x_ref : (tm, Lin)  packed rows, lane-dense (Lin multiple of 128)
    # o_ref : (tm, Lout) packed output, lane-dense (Lout multiple of 128)
    x = x_ref[...].astype(jnp.float32)
    rep = rep_ref[...]                                  # (Lin, Lout) bf16 0/1

    # Exact 3-term bf16 split of x: three single-pass bf16 MXU matmuls against
    # the 0/1 replicate matrix reproduce x to f32 precision (no HIGHEST).
    hi = x.astype(jnp.bfloat16)
    r1 = x - hi.astype(jnp.float32)
    mid = r1.astype(jnp.bfloat16)
    lo = (r1 - mid.astype(jnp.float32)).astype(jnp.bfloat16)

    def gather(t):
        return jnp.dot(t, rep, preferred_element_type=jnp.float32)

    xg = (gather(hi) + gather(mid)) + gather(lo)        # replicated x, (tm, Lout)
    arg = xg * fvec_ref[...] + phase_ref[...]           # freq scale + {0, pi/2}
    emb = jnp.sin(arg)                                  # ONE transcendental/lane
    if include_input:
        lane = lax.broadcasted_iota(jnp.int32, (1, arg.shape[-1]), 1)
        is_id = (lane % out_dim) < input_dim            # identity-piece lanes
        emb = jnp.where(is_id, arg, emb)                # fvec=1, phase=0 there
    o_ref[...] = emb.astype(o_ref.dtype)


def pallas_embedder(x, *, max_freq_log2, n_freqs, log_sampling=True,
                    include_input=True, out_dtype=None,
                    block_out_bytes=2 * 1024 * 1024):
    """Positional embedding matching Embedder.forward.  x: (..., D) -> (..., out_dim)."""
    input_dim = x.shape[-1]
    freq_bands = _make_freq_bands(max_freq_log2, n_freqs, log_sampling)
    n_pieces = (1 if include_input else 0) + 2 * len(freq_bands)
    assert n_pieces > 0, "Embedder with no output pieces"
    out_dim = n_pieces * input_dim
    out_dtype = jnp.dtype(x.dtype if out_dtype is None else out_dtype)

    lead = x.shape[:-1]
    n_rows = int(np.prod(lead)) if lead else 1

    # Pack K logical rows per lane group so both the input (K*D lanes) and the
    # output (K*out_dim lanes) are multiples of 128 -> unmasked vld/vst.
    k_pack = math.lcm(input_dim, 128) // input_dim
    lin = k_pack * input_dim
    lout = k_pack * out_dim
    # TODO(synk): for very large input_dim the replicate matrix would not fit
    # VMEM; a different (sublane-replicate) layout would be needed there.
    assert lin * lout * 2 <= 16 * 1024 * 1024, "input_dim too large for packed layout"

    x2d = x.reshape(n_rows, input_dim)
    n_pad = _round_up(n_rows, k_pack)
    if n_pad != n_rows:
        # Only hit when n_rows is not a multiple of k_pack (pad + final slice).
        x2d = jnp.pad(x2d, ((0, n_pad - n_rows), (0, 0)))
    r_rows = n_pad // k_pack
    xp = x2d.reshape(r_rows, lin)                       # free contiguous reshape

    rep_np, fvec_np, phase_np = _build_constants(
        input_dim, freq_bands, include_input, k_pack)
    rep = jnp.asarray(rep_np, dtype=jnp.bfloat16)       # 0/1 -> bf16-exact
    fvec = jnp.asarray(fvec_np, dtype=jnp.float32)
    phase = jnp.asarray(phase_np, dtype=jnp.float32)

    # Tile over packed rows: ~block_out_bytes of f32 output per block, and at
    # least 2 blocks when there is enough work (v7x has 2 TensorCores).
    tm_cap = max(8, (block_out_bytes // (lout * 4)) // 8 * 8)
    if r_rows <= 16:
        tm = r_rows                                     # full-dim block (always legal)
    else:
        tm = min(tm_cap, _round_up(-(-r_rows // 2), 8))
    grid = (pl.cdiv(r_rows, tm),)                       # ragged last block -> masked

    kernel = functools.partial(_embed_kernel, out_dim=out_dim,
                               input_dim=input_dim, include_input=include_input)

    flops = r_rows * (3 * 2 * lin * lout + 5 * lout)
    transcendentals = r_rows * lout
    bytes_accessed = (r_rows * (lin * x2d.dtype.itemsize + lout * out_dtype.itemsize)
                      + rep.size * 2 + (fvec.size + phase.size) * 4)

    outp = pl.pallas_call(
        kernel,
        out_shape=jax.ShapeDtypeStruct((r_rows, lout), out_dtype),
        grid_spec=pltpu.PrefetchScalarGridSpec(
            num_scalar_prefetch=0,
            grid=grid,
            in_specs=[
                pl.BlockSpec((tm, lin), lambda i: (i, 0)),
                pl.BlockSpec((lin, lout), lambda i: (0, 0)),
                pl.BlockSpec((1, lout), lambda i: (0, 0)),
                pl.BlockSpec((1, lout), lambda i: (0, 0)),
            ],
            out_specs=pl.BlockSpec((tm, lout), lambda i: (i, 0)),
        ),
        compiler_params=pltpu.CompilerParams(
            dimension_semantics=("parallel",),
            vmem_limit_bytes=32 * 1024 * 1024),
        cost_estimate=pl.CostEstimate(flops=flops,
                                      transcendentals=transcendentals,
                                      bytes_accessed=bytes_accessed),
    )(xp, rep, fvec, phase)

    out2d = outp.reshape(n_pad, out_dim)                # free contiguous reshape
    if n_pad != n_rows:
        out2d = out2d[:n_rows]
    return out2d.reshape(*lead, out_dim)


def _reference_embedder(x, *, max_freq_log2, n_freqs, log_sampling=True,
                        include_input=True):
    freq_bands = _make_freq_bands(max_freq_log2, n_freqs, log_sampling)
    outs = []
    if include_input:
        outs.append(x)
    for f in freq_bands:
        outs.append(jnp.sin(x * f))
        outs.append(jnp.cos(x * f))
    return jnp.concatenate(outs, axis=-1)


if __name__ == "__main__":
    # Module config: input_dim=4, N_freqs=4, max_freq_log2=3 (log sampling).
    input_dim = 4
    n_freqs = 4
    max_freq_log2 = 3.0

    key = jax.random.PRNGKey(0)
    # Small batch of points: (2, 16, 4) -> output (2, 16, 4*(1+2*4)=36).
    x = jax.random.normal(key, (2, 16, input_dim), dtype=jnp.float32)

    out = pallas_embedder(x, max_freq_log2=max_freq_log2, n_freqs=n_freqs)
    out = jax.block_until_ready(out)

    ref = _reference_embedder(x, max_freq_log2=max_freq_log2, n_freqs=n_freqs)
    expected_out_dim = input_dim * (1 + 2 * n_freqs)
    assert out.shape == (2, 16, expected_out_dim), out.shape
    max_err = float(jnp.max(jnp.abs(out - ref)))
    assert max_err < 2e-5, max_err
    print("KERNEL_OK")
</pallas_src>

<mosaic_0001>
module attributes {stable_mosaic.version = 11 : i64} {
  func.func @_embed_kernel(%arg0: i32, %arg1: memref<1x128xf32, #tpu.memory_space<vmem>>, %arg2: memref<128x1152xbf16, #tpu.memory_space<vmem>>, %arg3: memref<1x1152xf32, #tpu.memory_space<vmem>>, %arg4: memref<1x1152xf32, #tpu.memory_space<vmem>>, %arg5: memref<1x1152xf32, #tpu.memory_space<vmem>>) attributes {dimension_semantics = [#tpu.dimension_semantics<parallel>], iteration_bounds = array<i64: 1>, scalar_prefetch = 0 : i64, scratch_operands = 0 : i64, tpu.core_type = #tpu.core_type<tc>, window_params = [{transform_indices = @transform_0, window_bounds = array<i64: 1, 128>}, {pipeline_mode = #tpu.pipeline_mode<synchronous>, transform_indices = @transform_1, window_bounds = array<i64: 128, 1152>}, {pipeline_mode = #tpu.pipeline_mode<synchronous>, transform_indices = @transform_2, window_bounds = array<i64: 1, 1152>}, {pipeline_mode = #tpu.pipeline_mode<synchronous>, transform_indices = @transform_3, window_bounds = array<i64: 1, 1152>}, {transform_indices = @transform_4, window_bounds = array<i64: 1, 1152>}]} {
    %c0 = arith.constant 0 : index
    %c0_0 = arith.constant 0 : index
    %0 = vector.load %arg1[%c0, %c0_0] : memref<1x128xf32, #tpu.memory_space<vmem>>, vector<1x128xf32>
    %c0_1 = arith.constant 0 : index
    %c0_2 = arith.constant 0 : index
    %1 = vector.load %arg2[%c0_1, %c0_2] : memref<128x1152xbf16, #tpu.memory_space<vmem>>, vector<128x1152xbf16>
    %2 = arith.truncf %0 : vector<1x128xf32> to vector<1x128xbf16>
    %3 = arith.extf %2 : vector<1x128xbf16> to vector<1x128xf32>
    %4 = arith.subf %0, %3 : vector<1x128xf32>
    %5 = arith.truncf %4 : vector<1x128xf32> to vector<1x128xbf16>
    %6 = arith.extf %5 : vector<1x128xbf16> to vector<1x128xf32>
    %7 = arith.subf %4, %6 : vector<1x128xf32>
    %8 = arith.truncf %7 : vector<1x128xf32> to vector<1x128xbf16>
    %cst = arith.constant dense<0.000000e+00> : vector<1x1152xf32>
    %9 = tpu.matmul %2, %1, %cst {dimension_numbers = #tpu.dot_dimension_numbers<[1], [0], [0], [1], [0, 0, 1, 1], [], []>} : vector<1x128xbf16>, vector<128x1152xbf16>, vector<1x1152xf32> -> vector<1x1152xf32>
    %cst_3 = arith.constant dense<0.000000e+00> : vector<1x1152xf32>
    %10 = tpu.matmul %5, %1, %cst_3 {dimension_numbers = #tpu.dot_dimension_numbers<[1], [0], [0], [1], [0, 0, 1, 1], [], []>} : vector<1x128xbf16>, vector<128x1152xbf16>, vector<1x1152xf32> -> vector<1x1152xf32>
    %11 = arith.addf %9, %10 : vector<1x1152xf32>
    %cst_4 = arith.constant dense<0.000000e+00> : vector<1x1152xf32>
    %12 = tpu.matmul %8, %1, %cst_4 {dimension_numbers = #tpu.dot_dimension_numbers<[1], [0], [0], [1], [0, 0, 1, 1], [], []>} : vector<1x128xbf16>, vector<128x1152xbf16>, vector<1x1152xf32> -> vector<1x1152xf32>
    %13 = arith.addf %11, %12 : vector<1x1152xf32>
    %c0_5 = arith.constant 0 : index
    %c0_6 = arith.constant 0 : index
    %14 = vector.load %arg3[%c0_5, %c0_6] : memref<1x1152xf32, #tpu.memory_space<vmem>>, vector<1x1152xf32>
    %15 = arith.mulf %13, %14 : vector<1x1152xf32>
    %c0_7 = arith.constant 0 : index
    %c0_8 = arith.constant 0 : index
    %16 = vector.load %arg4[%c0_7, %c0_8] : memref<1x1152xf32, #tpu.memory_space<vmem>>, vector<1x1152xf32>
    %17 = arith.addf %15, %16 : vector<1x1152xf32>
    %18 = math.sin %17 : vector<1x1152xf32>
    %19 = tpu.iota {dimensions = array<i32: 1>} : vector<1x1152xi32>
    %c36_i32 = arith.constant 36 : i32
    %c0_i32 = arith.constant 0 : i32
    %20 = arith.cmpi eq, %c36_i32, %c0_i32 : i32
    %c1_i32 = arith.constant 1 : i32
    %21 = arith.select %20, %c1_i32, %c36_i32 : i32
    %22 = vector.broadcast %21 : i32 to vector<1x1152xi32>
    %23 = arith.remsi %19, %22 : vector<1x1152xi32>
    %c0_i32_9 = arith.constant 0 : i32
    %24 = vector.broadcast %c0_i32_9 : i32 to vector<1x1152xi32>
    %25 = arith.cmpi ne, %23, %24 : vector<1x1152xi32>
    %c0_i32_10 = arith.constant 0 : i32
    %26 = vector.broadcast %c0_i32_10 : i32 to vector<1x1152xi32>
    %27 = arith.cmpi slt, %23, %26 : vector<1x1152xi32>
    %c0_i32_11 = arith.constant 0 : i32
    %28 = arith.cmpi slt, %21, %c0_i32_11 : i32
    %29 = vector.broadcast %28 : i1 to vector<1x1152xi1>
    %30 = vector.broadcast %29 : vector<1x1152xi1> to vector<1x1152xi1>
    %31 = arith.xori %27, %30 : vector<1x1152xi1>
    %32 = arith.andi %31, %25 : vector<1x1152xi1>
    %33 = vector.broadcast %21 : i32 to vector<1x1152xi32>
    %34 = arith.addi %23, %33 : vector<1x1152xi32>
    %35 = arith.select %32, %34, %23 : vector<1x1152xi1>, vector<1x1152xi32>
    %c4_i32 = arith.constant 4 : i32
    %36 = vector.broadcast %c4_i32 : i32 to vector<1x1152xi32>
    %37 = arith.cmpi slt, %35, %36 : vector<1x1152xi32>
    %38 = arith.select %37, %17, %18 : vector<1x1152xi1>, vector<1x1152xf32>
    %c0_12 = arith.constant 0 : index
    %c0_13 = arith.constant 0 : index
    %39 = vector.load %arg5[%c0_12, %c0_13] : memref<1x1152xf32, #tpu.memory_space<vmem>>, vector<1x1152xf32>
    tpu.vector_store %arg5[%c0_12, %c0_13], %38 {strides = array<i32>} : memref<1x1152xf32, #tpu.memory_space<vmem>>, vector<1x1152xf32>,
    return
  }
  func.func @transform_0(%arg0: i32) -> (i32, i32) {
    %c0_i32 = arith.constant 0 : i32
    %c0_i32_0 = arith.constant 0 : i32
    return %arg0, %c0_i32 : i32, i32
  }
  func.func @transform_1(%arg0: i32) -> (i32, i32) {
    %c0_i32 = arith.constant 0 : i32
    %c0_i32_0 = arith.constant 0 : i32
    %c0_i32_1 = arith.constant 0 : i32
    return %c0_i32, %c0_i32_0 : i32, i32
  }
  func.func @transform_2(%arg0: i32) -> (i32, i32) {
    %c0_i32 = arith.constant 0 : i32
    %c0_i32_0 = arith.constant 0 : i32
    %c0_i32_1 = arith.constant 0 : i32
    return %c0_i32, %c0_i32_0 : i32, i32
  }
  func.func @transform_3(%arg0: i32) -> (i32, i32) {
    %c0_i32 = arith.constant 0 : i32
    %c0_i32_0 = arith.constant 0 : i32
    %c0_i32_1 = arith.constant 0 : i32
    return %c0_i32, %c0_i32_0 : i32, i32
  }
  func.func @transform_4(%arg0: i32) -> (i32, i32) {
    %c0_i32 = arith.constant 0 : i32
    %c0_i32_0 = arith.constant 0 : i32
    return %arg0, %c0_i32 : i32, i32
  }
}

</mosaic_0001>

<llo_original>
// kernel: tpu_custom_call.1
$region0: #{tpu_custom_call.1}
  #allocation0 [shape = 'u32[]', space=smem, size = 0x4, offset = 0x4, fixed_abs, tag = 'smem constant byte address 0x4 - core index']
  #allocation1 [shape = 'u32[72,128]{1,0:T(1,128)}', space=vmem, size = 0x9000, scoped, tag = 'internal scratch']
  %s0 = inlined_call_operand.hbm [shape: f32[1,128], index: 0, kind: input, shape index: {}]
  %s1 = inlined_call_operand.hbm [shape: bf16[128,1152], index: 1, kind: input, shape index: {}]
  %s2 = inlined_call_operand.hbm [shape: f32[1,1152], index: 2, kind: input, shape index: {}]
  %s3 = inlined_call_operand.hbm [shape: f32[1,1152], index: 3, kind: input, shape index: {}]
  %s4 = inlined_call_operand.hbm [shape: f32[1,1152], index: 4, kind: output, shape index: {}]
  %s5 = sld [smem:[#allocation0]]
  $region42: #{tpu_custom_call.1} parent=0
    _
  %s7 = ssub.s32 1, %s5
  %s8 = scalar_select 0, %s7, %s5
  $region1: #{tpu_custom_call.1} parent=0
    #allocation2 [shape = 'u8[512]{0}', space=vmem, size = 0x400, scoped, tag = 'input window, operand 0, single buffered']
    #allocation3 [shape = 's32[1]{0}', space=sflag, size = 0x4, scoped, tag = 'scoped memory for tpu_custom_call.1']
    #allocation4 [shape = 's32[1]{0}', space=sflag, size = 0x4, scoped, tag = 'scoped memory for tpu_custom_call.1']
    #allocation5 [shape = 'u8[294912]{0}', space=vmem, size = 0x48000, scoped, tag = 'input window, operand 1, single buffered']
    #allocation6 [shape = 's32[1]{0}', space=sflag, size = 0x4, scoped, tag = 'scoped memory for tpu_custom_call.1']
    #allocation7 [shape = 'u8[4608]{0}', space=vmem, size = 0x1400, scoped, tag = 'input window, operand 2, single buffered']
    #allocation8 [shape = 'u8[4608]{0}', space=vmem, size = 0x1400, scoped, tag = 'input window, operand 3, single buffered']
    #allocation9 [shape = 's32[1]{0}', space=sflag, size = 0x4, scoped, tag = 'scoped memory for tpu_custom_call.1']
    #allocation10 [shape = 'u8[4608]{0}', space=vmem, size = 0x1400, scoped, tag = 'output window, operand 0, single buffered']
    %9 = vsyncpa [#allocation3], 0
    %10 = vsyncpa [#allocation6], 0
    %11 = vsyncpa [#allocation9], 0
    %12 = vsyncpa [#allocation4], 0
    // Predicated region
    $region2: #{tpu_custom_call.1} parent=1 // pred_check
      _
    $region3: #{tpu_custom_call.1} parent=1 // pred_check_branch
      %14 = sbr.rel (0) target = $region5
    $region4: #{tpu_custom_call.1} parent=1 // pred_region
      %16 = vsyncadd [#allocation3], 0
      %s18 = sshll.u32 %s0, 4
      %s19 = int_to_ptr.hbm [resolvable:$true] %s18
      %s20 = sshll.u32 [#allocation2], 4
      %s21 = int_to_ptr.vmem [resolvable:$true] %s20
      %23 = dma.hbm_to_vmem [thread:$0]  %s19, 16, %s21, [#allocation3]
    $region5: #{tpu_custom_call.1} parent=1 // pred_fallthru
      _
    // Predicated region
    $region6: #{tpu_custom_call.1} parent=1 // pred_check
      _
    $region7: #{tpu_custom_call.1} parent=1 // pred_check_branch
      %25 = sbr.rel (0) target = $region9
    $region8: #{tpu_custom_call.1} parent=1 // pred_region
      %27 = vsyncadd [#allocation6], 0
      %s28 = sshll.u32 %s1, 4
      %s29 = int_to_ptr.hbm [resolvable:$true] %s28
      %s30 = sshll.u32 [#allocation5], 4
      %s31 = int_to_ptr.vmem [resolvable:$true] %s30
      %36 = dma.hbm_to_vmem [thread:$0]  %s29, 9216, %s31, [#allocation6], 576, 576, 36
    $region9: #{tpu_custom_call.1} parent=1 // pred_fallthru
      _
    // Predicated region
    $region10: #{tpu_custom_call.1} parent=1 // pred_check
      _
    $region11: #{tpu_custom_call.1} parent=1 // pred_check_branch
      %38 = sbr.rel (0) target = $region13
    $region12: #{tpu_custom_call.1} parent=1 // pred_region
      %40 = vsyncadd [#allocation6], 0
      %s42 = sshll.u32 %s2, 4
      %s43 = int_to_ptr.hbm [resolvable:$true] %s42
      %s44 = sshll.u32 [#allocation7], 4
      %s45 = int_to_ptr.vmem [resolvable:$true] %s44
      %47 = dma.hbm_to_vmem [thread:$0]  %s43, 144, %s45, [#allocation6]
    $region13: #{tpu_custom_call.1} parent=1 // pred_fallthru
      _
    // Predicated region
    $region14: #{tpu_custom_call.1} parent=1 // pred_check
      _
    $region15: #{tpu_custom_call.1} parent=1 // pred_check_branch
      %49 = sbr.rel (0) target = $region17
    $region16: #{tpu_custom_call.1} parent=1 // pred_region
      %51 = vsyncadd [#allocation9], 0
      %s53 = sshll.u32 %s3, 4
      %s54 = int_to_ptr.hbm [resolvable:$true] %s53
      %s55 = sshll.u32 [#allocation8], 4
      %s56 = int_to_ptr.vmem [resolvable:$true] %s55
      %58 = dma.hbm_to_vmem [thread:$0]  %s54, 144, %s56, [#allocation9]
    $region17: #{tpu_custom_call.1} parent=1 // pred_fallthru
      _
    // Predicated region
    $region18: #{tpu_custom_call.1} parent=1 // pred_check
      _
    $region19: #{tpu_custom_call.1} parent=1 // pred_check_branch
      %60 = sbr.rel (0) target = $region21
    $region20: #{tpu_custom_call.1} parent=1 // pred_region
      %62 = dma.done [#allocation3], 16
    $region21: #{tpu_custom_call.1} parent=1 // pred_fallthru
      _
    // Predicated region
    $region22: #{tpu_custom_call.1} parent=1 // pred_check
      _
    $region23: #{tpu_custom_call.1} parent=1 // pred_check_branch
      %64 = sbr.rel (0) target = $region25
    $region24: #{tpu_custom_call.1} parent=1 // pred_region
      %66 = dma.done [#allocation6], 9216
    $region25: #{tpu_custom_call.1} parent=1 // pred_fallthru
      _
    // Predicated region
    $region26: #{tpu_custom_call.1} parent=1 // pred_check
      _
    $region27: #{tpu_custom_call.1} parent=1 // pred_check_branch
      %68 = sbr.rel (0) target = $region29
    $region28: #{tpu_custom_call.1} parent=1 // pred_region
      %70 = dma.done [#allocation6], 144
    $region29: #{tpu_custom_call.1} parent=1 // pred_fallthru
      _
    // Predicated region
    $region30: #{tpu_custom_call.1} parent=1 // pred_check
      _
    $region31: #{tpu_custom_call.1} parent=1 // pred_check_branch
      %72 = sbr.rel (0) target = $region33
    $region32: #{tpu_custom_call.1} parent=1 // pred_region
      %74 = dma.done [#allocation9], 144
    $region33: #{tpu_custom_call.1} parent=1 // pred_fallthru
      _
    %v75 = vld [vmem:[#allocation2] sm:$0x1]
    %v76 = vld [vmem:[#allocation5] sm:$0xff]
    %v77 = vld [vmem:[#allocation5 + $0x8] sm:$0xff]
    %v78 = vld [vmem:[#allocation5 + $0x10] sm:$0xff]
    %v79 = vld [vmem:[#allocation5 + $0x18] sm:$0xff]
    %v80 = vld [vmem:[#allocation5 + $0x20] sm:$0xf]
    %v81 = vld [vmem:[#allocation5 + $0x24] sm:$0xff]
    %v82 = vld [vmem:[#allocation5 + $0x2c] sm:$0xff]
    %v83 = vld [vmem:[#allocation5 + $0x34] sm:$0xff]
    %v84 = vld [vmem:[#allocation5 + $0x3c] sm:$0xff]
    %v85 = vld [vmem:[#allocation5 + $0x44] sm:$0xf]
    %v86 = vld [vmem:[#allocation5 + $0x48] sm:$0xff]
    %v87 = vld [vmem:[#allocation5 + $0x50] sm:$0xff]
    %v88 = vld [vmem:[#allocation5 + $0x58] sm:$0xff]
    %v89 = vld [vmem:[#allocation5 + $0x60] sm:$0xff]
    %v90 = vld [vmem:[#allocation5 + $0x68] sm:$0xf]
    %v91 = vld [vmem:[#allocation5 + $0x6c] sm:$0xff]
    %v92 = vld [vmem:[#allocation5 + $0x74] sm:$0xff]
    %v93 = vld [vmem:[#allocation5 + $0x7c] sm:$0xff]
    %v94 = vld [vmem:[#allocation5 + $0x84] sm:$0xff]
    %v95 = vld [vmem:[#allocation5 + $0x8c] sm:$0xf]
    %v96 = vld [vmem:[#allocation5 + $0x90] sm:$0xff]
    %v97 = vld [vmem:[#allocation5 + $0x98] sm:$0xff]
    %v98 = vld [vmem:[#allocation5 + $0xa0] sm:$0xff]
    %v99 = vld [vmem:[#allocation5 + $0xa8] sm:$0xff]
    %v100 = vld [vmem:[#allocation5 + $0xb0] sm:$0xf]
    %v101 = vld [vmem:[#allocation5 + $0xb4] sm:$0xff]
    %v102 = vld [vmem:[#allocation5 + $0xbc] sm:$0xff]
    %v103 = vld [vmem:[#allocation5 + $0xc4] sm:$0xff]
    %v104 = vld [vmem:[#allocation5 + $0xcc] sm:$0xff]
    %v105 = vld [vmem:[#allocation5 + $0xd4] sm:$0xf]
    %v106 = vld [vmem:[#allocation5 + $0xd8] sm:$0xff]
    %v107 = vld [vmem:[#allocation5 + $0xe0] sm:$0xff]
    %v108 = vld [vmem:[#allocation5 + $0xe8] sm:$0xff]
    %v109 = vld [vmem:[#allocation5 + $0xf0] sm:$0xff]
    %v110 = vld [vmem:[#allocation5 + $0xf8] sm:$0xf]
    %v111 = vld [vmem:[#allocation5 + $0xfc] sm:$0xff]
    %v112 = vld [vmem:[#allocation5 + $0x104] sm:$0xff]
    %v113 = vld [vmem:[#allocation5 + $0x10c] sm:$0xff]
    %v114 = vld [vmem:[#allocation5 + $0x114] sm:$0xff]
    %v115 = vld [vmem:[#allocation5 + $0x11c] sm:$0xf]
    %v116 = vld [vmem:[#allocation5 + $0x120] sm:$0xff]
    %v117 = vld [vmem:[#allocation5 + $0x128] sm:$0xff]
    %v118 = vld [vmem:[#allocation5 + $0x130] sm:$0xff]
    %v119 = vld [vmem:[#allocation5 + $0x138] sm:$0xff]
    %v120 = vld [vmem:[#allocation5 + $0x140] sm:$0xf]
    %v121 = vld [vmem:[#allocation5 + $0x144] sm:$0xff]
    %v122 = vld [vmem:[#allocation5 + $0x14c] sm:$0xff]
    %v123 = vld [vmem:[#allocation5 + $0x154] sm:$0xff]
    %v124 = vld [vmem:[#allocation5 + $0x15c] sm:$0xff]
    %v125 = vld [vmem:[#allocation5 + $0x164] sm:$0xf]
    %v126 = vld [vmem:[#allocation5 + $0x168] sm:$0xff]
    %v127 = vld [vmem:[#allocation5 + $0x170] sm:$0xff]
    %v128 = vld [vmem:[#allocation5 + $0x178] sm:$0xff]
    %v129 = vld [vmem:[#allocation5 + $0x180] sm:$0xff]
    %v130 = vld [vmem:[#allocation5 + $0x188] sm:$0xf]
    %v131 = vld [vmem:[#allocation5 + $0x18c] sm:$0xff]
    %v132 = vld [vmem:[#allocation5 + $0x194] sm:$0xff]
    %v133 = vld [vmem:[#allocation5 + $0x19c] sm:$0xff]
    %v134 = vld [vmem:[#allocation5 + $0x1a4] sm:$0xff]
    %v135 = vld [vmem:[#allocation5 + $0x1ac] sm:$0xf]
    %v136 = vld [vmem:[#allocation5 + $0x1b0] sm:$0xff]
    %v137 = vld [vmem:[#allocation5 + $0x1b8] sm:$0xff]
    %v138 = vld [vmem:[#allocation5 + $0x1c0] sm:$0xff]
    %v139 = vld [vmem:[#allocation5 + $0x1c8] sm:$0xff]
    %v140 = vld [vmem:[#allocation5 + $0x1d0] sm:$0xf]
    %v141 = vld [vmem:[#allocation5 + $0x1d4] sm:$0xff]
    %v142 = vld [vmem:[#allocation5 + $0x1dc] sm:$0xff]
    %v143 = vld [vmem:[#allocation5 + $0x1e4] sm:$0xff]
    %v144 = vld [vmem:[#allocation5 + $0x1ec] sm:$0xff]
    %v145 = vld [vmem:[#allocation5 + $0x1f4] sm:$0xf]
    %v146 = vld [vmem:[#allocation5 + $0x1f8] sm:$0xff]
    %v147 = vld [vmem:[#allocation5 + $0x200] sm:$0xff]
    %v148 = vld [vmem:[#allocation5 + $0x208] sm:$0xff]
    %v149 = vld [vmem:[#allocation5 + $0x210] sm:$0xff]
    %v150 = vld [vmem:[#allocation5 + $0x218] sm:$0xf]
    %v151 = vld [vmem:[#allocation5 + $0x21c] sm:$0xff]
    %v152 = vld [vmem:[#allocation5 + $0x224] sm:$0xff]
    %v153 = vld [vmem:[#allocation5 + $0x22c] sm:$0xff]
    %v154 = vld [vmem:[#allocation5 + $0x234] sm:$0xff]
    %v155 = vld [vmem:[#allocation5 + $0x23c] sm:$0xf]
    %v156 = vpack.c.bf16 %v75, %v75
    %v157 = vunpack.c.l.bf16 %v156
    %v158 = vsub.f32 %v75, %v157
    %v159 = vpack.c.bf16 %v158, %v158
    %v160 = vunpack.c.l.bf16 %v159
    %v161 = vsub.f32 %v158, %v160
    %v162 = vpack.c.bf16 %v161, %v161
    %v243 = vunpack.c.l.b16 %v76
    %v244 = vunpack.c.h.b16 %v76
    %v245 = vunpack.c.l.b16 %v77
    %v246 = vunpack.c.h.b16 %v77
    %v247 = vunpack.c.l.b16 %v78
    %v248 = vunpack.c.h.b16 %v78
    %v249 = vunpack.c.l.b16 %v79
    %v250 = vunpack.c.h.b16 %v79
    %v251 = vunpack.c.l.b16 %v80
    %v252 = vunpack.c.l.b16 %v81
    %v253 = vunpack.c.h.b16 %v81
    %v254 = vunpack.c.l.b16 %v82
    %v255 = vunpack.c.h.b16 %v82
    %v256 = vunpack.c.l.b16 %v83
    %v257 = vunpack.c.h.b16 %v83
    %v258 = vunpack.c.l.b16 %v84
    %v259 = vunpack.c.h.b16 %v84
    %v260 = vunpack.c.l.b16 %v85
    %v261 = vunpack.c.l.b16 %v86
    %v262 = vunpack.c.h.b16 %v86
    %v263 = vunpack.c.l.b16 %v87
    %v264 = vunpack.c.h.b16 %v87
    %v265 = vunpack.c.l.b16 %v88
    %v266 = vunpack.c.h.b16 %v88
    %v267 = vunpack.c.l.b16 %v89
    %v268 = vunpack.c.h.b16 %v89
    %v269 = vunpack.c.l.b16 %v90
    %v270 = vunpack.c.l.b16 %v91
    %v271 = vunpack.c.h.b16 %v91
    %v272 = vunpack.c.l.b16 %v92
    %v273 = vunpack.c.h.b16 %v92
    %v274 = vunpack.c.l.b16 %v93
    %v275 = vunpack.c.h.b16 %v93
    %v276 = vunpack.c.l.b16 %v94
    %v277 = vunpack.c.h.b16 %v94
    %v278 = vunpack.c.l.b16 %v95
    %v279 = vunpack.c.l.b16 %v96
    %v280 = vunpack.c.h.b16 %v96
    %v281 = vunpack.c.l.b16 %v97
    %v282 = vunpack.c.h.b16 %v97
    %v283 = vunpack.c.l.b16 %v98
    %v284 = vunpack.c.h.b16 %v98
    %v285 = vunpack.c.l.b16 %v99
    %v286 = vunpack.c.h.b16 %v99
    %v287 = vunpack.c.l.b16 %v100
    %v288 = vunpack.c.l.b16 %v101
    %v289 = vunpack.c.h.b16 %v101
    %v290 = vunpack.c.l.b16 %v102
    %v291 = vunpack.c.h.b16 %v102
    %v292 = vunpack.c.l.b16 %v103
    %v293 = vunpack.c.h.b16 %v103
    %v294 = vunpack.c.l.b16 %v104
    %v295 = vunpack.c.h.b16 %v104
    %v296 = vunpack.c.l.b16 %v105
    %v297 = vunpack.c.l.b16 %v106
    %v298 = vunpack.c.h.b16 %v106
    %v299 = vunpack.c.l.b16 %v107
    %v300 = vunpack.c.h.b16 %v107
    %v301 = vunpack.c.l.b16 %v108
    %v302 = vunpack.c.h.b16 %v108
    %v303 = vunpack.c.l.b16 %v109
    %v304 = vunpack.c.h.b16 %v109
    %v305 = vunpack.c.l.b16 %v110
    %v306 = vunpack.c.l.b16 %v111
    %v307 = vunpack.c.h.b16 %v111
    %v308 = vunpack.c.l.b16 %v112
    %v309 = vunpack.c.h.b16 %v112
    %v310 = vunpack.c.l.b16 %v113
    %v311 = vunpack.c.h.b16 %v113
    %v312 = vunpack.c.l.b16 %v114
    %v313 = vunpack.c.h.b16 %v114
    %v314 = vunpack.c.l.b16 %v115
    %v315 = vunpack.c.l.b16 %v116
    %v316 = vunpack.c.h.b16 %v116
    %v317 = vunpack.c.l.b16 %v117
    %v318 = vunpack.c.h.b16 %v117
    %v319 = vunpack.c.l.b16 %v118
    %v320 = vunpack.c.h.b16 %v118
    %v321 = vunpack.c.l.b16 %v119
    %v322 = vunpack.c.h.b16 %v119
    %v323 = vunpack.c.l.b16 %v120
    %v324 = vunpack.c.l.b16 %v121
    %v325 = vunpack.c.h.b16 %v121
    %v326 = vunpack.c.l.b16 %v122
    %v327 = vunpack.c.h.b16 %v122
    %v328 = vunpack.c.l.b16 %v123
    %v329 = vunpack.c.h.b16 %v123
    %v330 = vunpack.c.l.b16 %v124
    %v331 = vunpack.c.h.b16 %v124
    %v332 = vunpack.c.l.b16 %v125
    %v333 = vunpack.c.l.b16 %v126
    %v334 = vunpack.c.h.b16 %v126
    %v335 = vunpack.c.l.b16 %v127
    %v336 = vunpack.c.h.b16 %v127
    %v337 = vunpack.c.l.b16 %v128
    %v338 = vunpack.c.h.b16 %v128
    %v339 = vunpack.c.l.b16 %v129
    %v340 = vunpack.c.h.b16 %v129
    %v341 = vunpack.c.l.b16 %v130
    %v342 = vunpack.c.l.b16 %v131
    %v343 = vunpack.c.h.b16 %v131
    %v344 = vunpack.c.l.b16 %v132
    %v345 = vunpack.c.h.b16 %v132
    %v346 = vunpack.c.l.b16 %v133
    %v347 = vunpack.c.h.b16 %v133
    %v348 = vunpack.c.l.b16 %v134
    %v349 = vunpack.c.h.b16 %v134
    %v350 = vunpack.c.l.b16 %v135
    %v351 = vunpack.c.l.b16 %v136
    %v352 = vunpack.c.h.b16 %v136
    %v353 = vunpack.c.l.b16 %v137
    %v354 = vunpack.c.h.b16 %v137
    %v355 = vunpack.c.l.b16 %v138
    %v356 = vunpack.c.h.b16 %v138
    %v357 = vunpack.c.l.b16 %v139
    %v358 = vunpack.c.h.b16 %v139
    %v359 = vunpack.c.l.b16 %v140
    %v360 = vunpack.c.l.b16 %v141
    %v361 = vunpack.c.h.b16 %v141
    %v362 = vunpack.c.l.b16 %v142
    %v363 = vunpack.c.h.b16 %v142
    %v364 = vunpack.c.l.b16 %v143
    %v365 = vunpack.c.h.b16 %v143
    %v366 = vunpack.c.l.b16 %v144
    %v367 = vunpack.c.h.b16 %v144
    %v368 = vunpack.c.l.b16 %v145
    %v369 = vunpack.c.l.b16 %v146
    %v370 = vunpack.c.h.b16 %v146
    %v371 = vunpack.c.l.b16 %v147
    %v372 = vunpack.c.h.b16 %v147
    %v373 = vunpack.c.l.b16 %v148
    %v374 = vunpack.c.h.b16 %v148
    %v375 = vunpack.c.l.b16 %v149
    %v376 = vunpack.c.h.b16 %v149
    %v377 = vunpack.c.l.b16 %v150
    %v378 = vunpack.c.l.b16 %v151
    %v379 = vunpack.c.h.b16 %v151
    %v380 = vunpack.c.l.b16 %v152
    %v381 = vunpack.c.h.b16 %v152
    %v382 = vunpack.c.l.b16 %v153
    %v383 = vunpack.c.h.b16 %v153
    %v384 = vunpack.c.l.b16 %v154
    %v385 = vunpack.c.h.b16 %v154
    %v386 = vunpack.c.l.b16 %v155
    %v387 = vpack.c.b16 %v252, %v243
    %v388 = vpack.c.b16 %v253, %v244
    %v389 = vpack.c.b16 %v254, %v245
    %v390 = vpack.c.b16 %v255, %v246
    %v391 = vpack.c.b16 %v256, %v247
    %v392 = vpack.c.b16 %v257, %v248
    %v393 = vpack.c.b16 %v258, %v249
    %v394 = vpack.c.b16 %v259, %v250
    %v395 = vpack.c.b16 %v260, %v251
    %v396 = vpack.c.b16 %v270, %v261
    %v397 = vpack.c.b16 %v271, %v262
    %v398 = vpack.c.b16 %v272, %v263
    %v399 = vpack.c.b16 %v273, %v264
    %v400 = vpack.c.b16 %v274, %v265
    %v401 = vpack.c.b16 %v275, %v266
    %v402 = vpack.c.b16 %v276, %v267
    %v403 = vpack.c.b16 %v277, %v268
    %v404 = vpack.c.b16 %v278, %v269
    %v405 = vpack.c.b16 %v288, %v279
    %v406 = vpack.c.b16 %v289, %v280
    %v407 = vpack.c.b16 %v290, %v281
    %v408 = vpack.c.b16 %v291, %v282
    %v409 = vpack.c.b16 %v292, %v283
    %v410 = vpack.c.b16 %v293, %v284
    %v411 = vpack.c.b16 %v294, %v285
    %v412 = vpack.c.b16 %v295, %v286
    %v413 = vpack.c.b16 %v296, %v287
    %v414 = vpack.c.b16 %v306, %v297
    %v415 = vpack.c.b16 %v307, %v298
    %v416 = vpack.c.b16 %v308, %v299
    %v417 = vpack.c.b16 %v309, %v300
    %v418 = vpack.c.b16 %v310, %v301
    %v419 = vpack.c.b16 %v311, %v302
    %v420 = vpack.c.b16 %v312, %v303
    %v421 = vpack.c.b16 %v313, %v304
    %v422 = vpack.c.b16 %v314, %v305
    %v423 = vpack.c.b16 %v324, %v315
    %v424 = vpack.c.b16 %v325, %v316
    %v425 = vpack.c.b16 %v326, %v317
    %v426 = vpack.c.b16 %v327, %v318
    %v427 = vpack.c.b16 %v328, %v319
    %v428 = vpack.c.b16 %v329, %v320
    %v429 = vpack.c.b16 %v330, %v321
    %v430 = vpack.c.b16 %v331, %v322
    %v431 = vpack.c.b16 %v332, %v323
    %v432 = vpack.c.b16 %v342, %v333
    %v433 = vpack.c.b16 %v343, %v334
    %v434 = vpack.c.b16 %v344, %v335
    %v435 = vpack.c.b16 %v345, %v336
    %v436 = vpack.c.b16 %v346, %v337
    %v437 = vpack.c.b16 %v347, %v338
    %v438 = vpack.c.b16 %v348, %v339
    %v439 = vpack.c.b16 %v349, %v340
    %v440 = vpack.c.b16 %v350, %v341
    %v441 = vpack.c.b16 %v360, %v351
    %v442 = vpack.c.b16 %v361, %v352
    %v443 = vpack.c.b16 %v362, %v353
    %v444 = vpack.c.b16 %v363, %v354
    %v445 = vpack.c.b16 %v364, %v355
    %v446 = vpack.c.b16 %v365, %v356
    %v447 = vpack.c.b16 %v366, %v357
    %v448 = vpack.c.b16 %v367, %v358
    %v449 = vpack.c.b16 %v368, %v359
    %v450 = vpack.c.b16 %v378, %v369
    %v451 = vpack.c.b16 %v379, %v370
    %v452 = vpack.c.b16 %v380, %v371
    %v453 = vpack.c.b16 %v381, %v372
    %v454 = vpack.c.b16 %v382, %v373
    %v455 = vpack.c.b16 %v383, %v374
    %v456 = vpack.c.b16 %v384, %v375
    %v457 = vpack.c.b16 %v385, %v376
    %v458 = vpack.c.b16 %v386, %v377
    %531 = vmatpush.bf16.msra.mxu0 %v450
    %532 = vmatpush.bf16.msra.mxu0 %v441
    %533 = vmatpush.bf16.msra.mxu0 %v432
    %534 = vmatpush.bf16.msra.mxu0 %v423
    %535 = vmatpush.bf16.msra.mxu0 %v414
    %536 = vmatpush.bf16.msra.mxu0 %v405
    %537 = vmatpush.bf16.msra.mxu0 %v396
    %538 = vmatpush.bf16.msra.mxu0 %v387
    %539 = vmatmul.bf16.gmra.mxu0 %v159
    %v540 = vpop.f32.mrf.mxu0
    %v541 = vadd.f32 0.0, %v540
    %v542 = vpop.f32.mrf.mxu0
    %543 = vdwg.mxu0
    %544 = vmatpush.bf16.msra.mxu0 %v451
    %545 = vmatpush.bf16.msra.mxu0 %v442
    %546 = vmatpush.bf16.msra.mxu0 %v433
    %547 = vmatpush.bf16.msra.mxu0 %v424
    %548 = vmatpush.bf16.msra.mxu0 %v415
    %549 = vmatpush.bf16.msra.mxu0 %v406
    %550 = vmatpush.bf16.msra.mxu0 %v397
    %551 = vmatpush.bf16.msra.mxu0 %v388
    %552 = vmatmul.bf16.gmra.mxu0 %v159
    %v553 = vpop.f32.mrf.mxu0
    %v554 = vadd.f32 0.0, %v553
    %v555 = vpop.f32.mrf.mxu0
    %556 = vdwg.mxu0
    %557 = vmatpush.bf16.msra.mxu0 %v452
    %558 = vmatpush.bf16.msra.mxu0 %v443
    %559 = vmatpush.bf16.msra.mxu0 %v434
    %560 = vmatpush.bf16.msra.mxu0 %v425
    %561 = vmatpush.bf16.msra.mxu0 %v416
    %562 = vmatpush.bf16.msra.mxu0 %v407
    %563 = vmatpush.bf16.msra.mxu0 %v398
    %564 = vmatpush.bf16.msra.mxu0 %v389
    %565 = vmatmul.bf16.gmra.mxu0 %v159
    %v566 = vpop.f32.mrf.mxu0
    %v567 = vadd.f32 0.0, %v566
    %v568 = vpop.f32.mrf.mxu0
    %569 = vdwg.mxu0
    %570 = vmatpush.bf16.msra.mxu0 %v453
    %571 = vmatpush.bf16.msra.mxu0 %v444
    %572 = vmatpush.bf16.msra.mxu0 %v435
    %573 = vmatpush.bf16.msra.mxu0 %v426
    %574 = vmatpush.bf16.msra.mxu0 %v417
    %575 = vmatpush.bf16.msra.mxu0 %v408
    %576 = vmatpush.bf16.msra.mxu0 %v399
    %577 = vmatpush.bf16.msra.mxu0 %v390
    %578 = vmatmul.bf16.gmra.mxu0 %v159
    %v579 = vpop.f32.mrf.mxu0
    %v580 = vadd.f32 0.0, %v579
    %v581 = vpop.f32.mrf.mxu0
    %582 = vdwg.mxu0
    %583 = vmatpush.bf16.msra.mxu0 %v454
    %584 = vmatpush.bf16.msra.mxu0 %v445
    %585 = vmatpush.bf16.msra.mxu0 %v436
    %586 = vmatpush.bf16.msra.mxu0 %v427
    %587 = vmatpush.bf16.msra.mxu0 %v418
    %588 = vmatpush.bf16.msra.mxu0 %v409
    %589 = vmatpush.bf16.msra.mxu0 %v400
    %590 = vmatpush.bf16.msra.mxu0 %v391
    %591 = vmatmul.bf16.gmra.mxu0 %v159
    %v592 = vpop.f32.mrf.mxu0
    %v593 = vadd.f32 0.0, %v592
    %v594 = vpop.f32.mrf.mxu0
    %595 = vdwg.mxu0
    %596 = vmatpush.bf16.msra.mxu0 %v455
    %597 = vmatpush.bf16.msra.mxu0 %v446
    %598 = vmatpush.bf16.msra.mxu0 %v437
    %599 = vmatpush.bf16.msra.mxu0 %v428
    %600 = vmatpush.bf16.msra.mxu0 %v419
    %601 = vmatpush.bf16.msra.mxu0 %v410
    %602 = vmatpush.bf16.msra.mxu0 %v401
    %603 = vmatpush.bf16.msra.mxu0 %v392
    %604 = vmatmul.bf16.gmra.mxu0 %v159
    %v605 = vpop.f32.mrf.mxu0
    %v606 = vadd.f32 0.0, %v605
    %v607 = vpop.f32.mrf.mxu0
    %608 = vdwg.mxu0
    %609 = vmatpush.bf16.msra.mxu0 %v456
    %610 = vmatpush.bf16.msra.mxu0 %v447
    %611 = vmatpush.bf16.msra.mxu0 %v438
    %612 = vmatpush.bf16.msra.mxu0 %v429
    %613 = vmatpush.bf16.msra.mxu0 %v420
    %614 = vmatpush.bf16.msra.mxu0 %v411
    %615 = vmatpush.bf16.msra.mxu0 %v402
    %616 = vmatpush.bf16.msra.mxu0 %v393
    %617 = vmatmul.bf16.gmra.mxu0 %v159
    %v618 = vpop.f32.mrf.mxu0
    %v619 = vadd.f32 0.0, %v618
    %v620 = vpop.f32.mrf.mxu0
    %621 = vdwg.mxu0
    %622 = vmatpush.bf16.msra.mxu0 %v457
    %623 = vmatpush.bf16.msra.mxu0 %v448
    %624 = vmatpush.bf16.msra.mxu0 %v439
    %625 = vmatpush.bf16.msra.mxu0 %v430
    %626 = vmatpush.bf16.msra.mxu0 %v421
    %627 = vmatpush.bf16.msra.mxu0 %v412
    %628 = vmatpush.bf16.msra.mxu0 %v403
    %629 = vmatpush.bf16.msra.mxu0 %v394
    %630 = vmatmul.bf16.gmra.mxu0 %v159
    %v631 = vpop.f32.mrf.mxu0
    %v632 = vadd.f32 0.0, %v631
    %v633 = vpop.f32.mrf.mxu0
    %634 = vdwg.mxu0
    %635 = vmatpush.bf16.msra.mxu0 %v458
    %636 = vmatpush.bf16.msra.mxu0 %v449
    %637 = vmatpush.bf16.msra.mxu0 %v440
    %638 = vmatpush.bf16.msra.mxu0 %v431
    %639 = vmatpush.bf16.msra.mxu0 %v422
    %640 = vmatpush.bf16.msra.mxu0 %v413
    %641 = vmatpush.bf16.msra.mxu0 %v404
    %642 = vmatpush.bf16.msra.mxu0 %v395
    %643 = vmatmul.bf16.gmra.mxu0 %v159
    %v644 = vpop.f32.mrf.mxu0
    %v645 = vadd.f32 0.0, %v644
    %v646 = vpop.f32.mrf.mxu0
    %647 = vdwg.mxu0
    %648 = vmatpush.bf16.msra.mxu0 %v450
    %649 = vmatpush.bf16.msra.mxu0 %v441
    %650 = vmatpush.bf16.msra.mxu0 %v432
    %651 = vmatpush.bf16.msra.mxu0 %v423
    %652 = vmatpush.bf16.msra.mxu0 %v414
    %653 = vmatpush.bf16.msra.mxu0 %v405
    %654 = vmatpush.bf16.msra.mxu0 %v396
    %655 = vmatpush.bf16.msra.mxu0 %v387
    %656 = vmatmul.bf16.gmra.mxu0 %v156
    %v657 = vpop.f32.mrf.mxu0
    %v658 = vadd.f32 %v541, %v657
    %v659 = vpop.f32.mrf.mxu0
    %660 = vdwg.mxu0
    %661 = vmatpush.bf16.msra.mxu0 %v451
    %662 = vmatpush.bf16.msra.mxu0 %v442
    %663 = vmatpush.bf16.msra.mxu0 %v433
    %664 = vmatpush.bf16.msra.mxu0 %v424
    %665 = vmatpush.bf16.msra.mxu0 %v415
    %666 = vmatpush.bf16.msra.mxu0 %v406
    %667 = vmatpush.bf16.msra.mxu0 %v397
    %668 = vmatpush.bf16.msra.mxu0 %v388
    %669 = vmatmul.bf16.gmra.mxu0 %v156
    %v670 = vpop.f32.mrf.mxu0
    %v671 = vadd.f32 %v554, %v670
    %v672 = vpop.f32.mrf.mxu0
    %673 = vdwg.mxu0
    %674 = vmatpush.bf16.msra.mxu0 %v452
    %675 = vmatpush.bf16.msra.mxu0 %v443
    %676 = vmatpush.bf16.msra.mxu0 %v434
    %677 = vmatpush.bf16.msra.mxu0 %v425
    %678 = vmatpush.bf16.msra.mxu0 %v416
    %679 = vmatpush.bf16.msra.mxu0 %v407
    %680 = vmatpush.bf16.msra.mxu0 %v398
    %681 = vmatpush.bf16.msra.mxu0 %v389
    %682 = vmatmul.bf16.gmra.mxu0 %v156
    %v683 = vpop.f32.mrf.mxu0
    %v684 = vadd.f32 %v567, %v683
    %v685 = vpop.f32.mrf.mxu0
    %686 = vdwg.mxu0
    %687 = vmatpush.bf16.msra.mxu0 %v453
    %688 = vmatpush.bf16.msra.mxu0 %v444
    %689 = vmatpush.bf16.msra.mxu0 %v435
    %690 = vmatpush.bf16.msra.mxu0 %v426
    %691 = vmatpush.bf16.msra.mxu0 %v417
    %692 = vmatpush.bf16.msra.mxu0 %v408
    %693 = vmatpush.bf16.msra.mxu0 %v399
    %694 = vmatpush.bf16.msra.mxu0 %v390
    %695 = vmatmul.bf16.gmra.mxu0 %v156
    %v696 = vpop.f32.mrf.mxu0
    %v697 = vadd.f32 %v580, %v696
    %v698 = vpop.f32.mrf.mxu0
    %699 = vdwg.mxu0
    %700 = vmatpush.bf16.msra.mxu0 %v454
    %701 = vmatpush.bf16.msra.mxu0 %v445
    %702 = vmatpush.bf16.msra.mxu0 %v436
    %703 = vmatpush.bf16.msra.mxu0 %v427
    %704 = vmatpush.bf16.msra.mxu0 %v418
    %705 = vmatpush.bf16.msra.mxu0 %v409
    %706 = vmatpush.bf16.msra.mxu0 %v400
    %707 = vmatpush.bf16.msra.mxu0 %v391
    %708 = vmatmul.bf16.gmra.mxu0 %v156
    %v709 = vpop.f32.mrf.mxu0
    %v710 = vadd.f32 %v593, %v709
    %v711 = vpop.f32.mrf.mxu0
    %712 = vdwg.mxu0
    %713 = vmatpush.bf16.msra.mxu0 %v455
    %714 = vmatpush.bf16.msra.mxu0 %v446
    %715 = vmatpush.bf16.msra.mxu0 %v437
    %716 = vmatpush.bf16.msra.mxu0 %v428
    %717 = vmatpush.bf16.msra.mxu0 %v419
    %718 = vmatpush.bf16.msra.mxu0 %v410
    %719 = vmatpush.bf16.msra.mxu0 %v401
    %720 = vmatpush.bf16.msra.mxu0 %v392
    %721 = vmatmul.bf16.gmra.mxu0 %v156
    %v722 = vpop.f32.mrf.mxu0
    %v723 = vadd.f32 %v606, %v722
    %v724 = vpop.f32.mrf.mxu0
    %725 = vdwg.mxu0
    %726 = vmatpush.bf16.msra.mxu0 %v456
    %727 = vmatpush.bf16.msra.mxu0 %v447
    %728 = vmatpush.bf16.msra.mxu0 %v438
    %729 = vmatpush.bf16.msra.mxu0 %v429
    %730 = vmatpush.bf16.msra.mxu0 %v420
    %731 = vmatpush.bf16.msra.mxu0 %v411
    %732 = vmatpush.bf16.msra.mxu0 %v402
    %733 = vmatpush.bf16.msra.mxu0 %v393
    %734 = vmatmul.bf16.gmra.mxu0 %v156
    %v735 = vpop.f32.mrf.mxu0
    %v736 = vadd.f32 %v619, %v735
    %v737 = vpop.f32.mrf.mxu0
    %738 = vdwg.mxu0
    %739 = vmatpush.bf16.msra.mxu0 %v457
    %740 = vmatpush.bf16.msra.mxu0 %v448
    %741 = vmatpush.bf16.msra.mxu0 %v439
    %742 = vmatpush.bf16.msra.mxu0 %v430
    %743 = vmatpush.bf16.msra.mxu0 %v421
    %744 = vmatpush.bf16.msra.mxu0 %v412
    %745 = vmatpush.bf16.msra.mxu0 %v403
    %746 = vmatpush.bf16.msra.mxu0 %v394
    %747 = vmatmul.bf16.gmra.mxu0 %v156
    %v748 = vpop.f32.mrf.mxu0
    %v749 = vadd.f32 %v632, %v748
    %v750 = vpop.f32.mrf.mxu0
    %751 = vdwg.mxu0
    %752 = vmatpush.bf16.msra.mxu0 %v458
    %753 = vmatpush.bf16.msra.mxu0 %v449
    %754 = vmatpush.bf16.msra.mxu0 %v440
    %755 = vmatpush.bf16.msra.mxu0 %v431
    %756 = vmatpush.bf16.msra.mxu0 %v422
    %757 = vmatpush.bf16.msra.mxu0 %v413
    %758 = vmatpush.bf16.msra.mxu0 %v404
    %759 = vmatpush.bf16.msra.mxu0 %v395
    %760 = vmatmul.bf16.gmra.mxu0 %v156
    %v761 = vpop.f32.mrf.mxu0
    %v762 = vadd.f32 %v645, %v761
    %v763 = vpop.f32.mrf.mxu0
    %764 = vdwg.mxu0
    %765 = vmatpush.bf16.msra.mxu0 %v450
    %766 = vmatpush.bf16.msra.mxu0 %v441
    %767 = vmatpush.bf16.msra.mxu0 %v432
    %768 = vmatpush.bf16.msra.mxu0 %v423
    %769 = vmatpush.bf16.msra.mxu0 %v414
    %770 = vmatpush.bf16.msra.mxu0 %v405
    %771 = vmatpush.bf16.msra.mxu0 %v396
    %772 = vmatpush.bf16.msra.mxu0 %v387
    %773 = vmatmul.bf16.gmra.mxu0 %v162
    %v774 = vpop.f32.mrf.mxu0
    %v775 = vadd.f32 0.0, %v774
    %v776 = vpop.f32.mrf.mxu0
    %777 = vdwg.mxu0
    %778 = vmatpush.bf16.msra.mxu0 %v451
    %779 = vmatpush.bf16.msra.mxu0 %v442
    %780 = vmatpush.bf16.msra.mxu0 %v433
    %781 = vmatpush.bf16.msra.mxu0 %v424
    %782 = vmatpush.bf16.msra.mxu0 %v415
    %783 = vmatpush.bf16.msra.mxu0 %v406
    %784 = vmatpush.bf16.msra.mxu0 %v397
    %785 = vmatpush.bf16.msra.mxu0 %v388
    %786 = vmatmul.bf16.gmra.mxu0 %v162
    %v787 = vpop.f32.mrf.mxu0
    %v788 = vadd.f32 0.0, %v787
    %v789 = vpop.f32.mrf.mxu0
    %790 = vdwg.mxu0
    %791 = vmatpush.bf16.msra.mxu0 %v452
    %792 = vmatpush.bf16.msra.mxu0 %v443
    %793 = vmatpush.bf16.msra.mxu0 %v434
    %794 = vmatpush.bf16.msra.mxu0 %v425
    %795 = vmatpush.bf16.msra.mxu0 %v416
    %796 = vmatpush.bf16.msra.mxu0 %v407
    %797 = vmatpush.bf16.msra.mxu0 %v398
    %798 = vmatpush.bf16.msra.mxu0 %v389
    %799 = vmatmul.bf16.gmra.mxu0 %v162
    %v800 = vpop.f32.mrf.mxu0
    %v801 = vadd.f32 0.0, %v800
    %v802 = vpop.f32.mrf.mxu0
    %803 = vdwg.mxu0
    %804 = vmatpush.bf16.msra.mxu0 %v453
    %805 = vmatpush.bf16.msra.mxu0 %v444
    %806 = vmatpush.bf16.msra.mxu0 %v435
    %807 = vmatpush.bf16.msra.mxu0 %v426
    %808 = vmatpush.bf16.msra.mxu0 %v417
    %809 = vmatpush.bf16.msra.mxu0 %v408
    %810 = vmatpush.bf16.msra.mxu0 %v399
    %811 = vmatpush.bf16.msra.mxu0 %v390
    %812 = vmatmul.bf16.gmra.mxu0 %v162
    %v813 = vpop.f32.mrf.mxu0
    %v814 = vadd.f32 0.0, %v813
    %v815 = vpop.f32.mrf.mxu0
    %816 = vdwg.mxu0
    %817 = vmatpush.bf16.msra.mxu0 %v454
    %818 = vmatpush.bf16.msra.mxu0 %v445
    %819 = vmatpush.bf16.msra.mxu0 %v436
    %820 = vmatpush.bf16.msra.mxu0 %v427
    %821 = vmatpush.bf16.msra.mxu0 %v418
    %822 = vmatpush.bf16.msra.mxu0 %v409
    %823 = vmatpush.bf16.msra.mxu0 %v400
    %824 = vmatpush.bf16.msra.mxu0 %v391
    %825 = vmatmul.bf16.gmra.mxu0 %v162
    %v826 = vpop.f32.mrf.mxu0
    %v827 = vadd.f32 0.0, %v826
    %v828 = vpop.f32.mrf.mxu0
    %829 = vdwg.mxu0
    %830 = vmatpush.bf16.msra.mxu0 %v455
    %831 = vmatpush.bf16.msra.mxu0 %v446
    %832 = vmatpush.bf16.msra.mxu0 %v437
    %833 = vmatpush.bf16.msra.mxu0 %v428
    %834 = vmatpush.bf16.msra.mxu0 %v419
    %835 = vmatpush.bf16.msra.mxu0 %v410
    %836 = vmatpush.bf16.msra.mxu0 %v401
    %837 = vmatpush.bf16.msra.mxu0 %v392
    %838 = vmatmul.bf16.gmra.mxu0 %v162
    %v839 = vpop.f32.mrf.mxu0
    %v840 = vadd.f32 0.0, %v839
    %v841 = vpop.f32.mrf.mxu0
    %842 = vdwg.mxu0
    %843 = vmatpush.bf16.msra.mxu0 %v456
    %844 = vmatpush.bf16.msra.mxu0 %v447
    %845 = vmatpush.bf16.msra.mxu0 %v438
    %846 = vmatpush.bf16.msra.mxu0 %v429
    %847 = vmatpush.bf16.msra.mxu0 %v420
    %848 = vmatpush.bf16.msra.mxu0 %v411
    %849 = vmatpush.bf16.msra.mxu0 %v402
    %850 = vmatpush.bf16.msra.mxu0 %v393
    %851 = vmatmul.bf16.gmra.mxu0 %v162
    %v852 = vpop.f32.mrf.mxu0
    %v853 = vadd.f32 0.0, %v852
    %v854 = vpop.f32.mrf.mxu0
    %855 = vdwg.mxu0
    %856 = vmatpush.bf16.msra.mxu0 %v457
    %857 = vmatpush.bf16.msra.mxu0 %v448
    %858 = vmatpush.bf16.msra.mxu0 %v439
    %859 = vmatpush.bf16.msra.mxu0 %v430
    %860 = vmatpush.bf16.msra.mxu0 %v421
    %861 = vmatpush.bf16.msra.mxu0 %v412
    %862 = vmatpush.bf16.msra.mxu0 %v403
    %863 = vmatpush.bf16.msra.mxu0 %v394
    %864 = vmatmul.bf16.gmra.mxu0 %v162
    %v865 = vpop.f32.mrf.mxu0
    %v866 = vadd.f32 0.0, %v865
    %v867 = vpop.f32.mrf.mxu0
    %868 = vdwg.mxu0
    %869 = vmatpush.bf16.msra.mxu0 %v458
    %870 = vmatpush.bf16.msra.mxu0 %v449
    %871 = vmatpush.bf16.msra.mxu0 %v440
    %872 = vmatpush.bf16.msra.mxu0 %v431
    %873 = vmatpush.bf16.msra.mxu0 %v422
    %874 = vmatpush.bf16.msra.mxu0 %v413
    %875 = vmatpush.bf16.msra.mxu0 %v404
    %876 = vmatpush.bf16.msra.mxu0 %v395
    %877 = vmatmul.bf16.gmra.mxu0 %v162
    %v878 = vpop.f32.mrf.mxu0
    %v879 = vadd.f32 0.0, %v878
    %v880 = vpop.f32.mrf.mxu0
    %881 = vdwg.mxu0
    %v882 = vadd.f32 %v658, %v775
    %v883 = vadd.f32 %v671, %v788
    %v884 = vadd.f32 %v684, %v801
    %v885 = vadd.f32 %v697, %v814
    %v886 = vadd.f32 %v710, %v827
    %v887 = vadd.f32 %v723, %v840
    %v888 = vadd.f32 %v736, %v853
    %v889 = vadd.f32 %v749, %v866
    %v890 = vadd.f32 %v762, %v879
    %v891 = vld [vmem:[#allocation7] sm:$0xff]
    %v892 = vld [vmem:[#allocation7 + $0x8] sm:$0x1]
    %v895 = vperm.slane %v891, 0
    %v896 = vperm.slane %v891, 1
    %v897 = vperm.slane %v891, 2
    %v898 = vperm.slane %v891, 3
    %v899 = vperm.slane %v891, 4
    %v900 = vperm.slane %v891, 5
    %v901 = vperm.slane %v891, 6
    %v902 = vperm.slane %v891, 7
    %v903 = vperm.slane %v892, 0
    %v913 = vmul.f32 %v882, %v895
    %v914 = vmul.f32 %v883, %v896
    %v915 = vmul.f32 %v884, %v897
    %v916 = vmul.f32 %v885, %v898
    %v917 = vmul.f32 %v886, %v899
    %v918 = vmul.f32 %v887, %v900
    %v919 = vmul.f32 %v888, %v901
    %v920 = vmul.f32 %v889, %v902
    %v921 = vmul.f32 %v890, %v903
    %v922 = vld [vmem:[#allocation8] sm:$0xff]
    %v923 = vld [vmem:[#allocation8 + $0x8] sm:$0x1]
    %v926 = vperm.slane %v922, 0
    %v927 = vperm.slane %v922, 1
    %v928 = vperm.slane %v922, 2
    %v929 = vperm.slane %v922, 3
    %v930 = vperm.slane %v922, 4
    %v931 = vperm.slane %v922, 5
    %v932 = vperm.slane %v922, 6
    %v933 = vperm.slane %v922, 7
    %v934 = vperm.slane %v923, 0
    %v944 = vadd.f32 %v913, %v926
    %v945 = vadd.f32 %v914, %v927
    %v946 = vadd.f32 %v915, %v928
    %v947 = vadd.f32 %v916, %v929
    %v948 = vadd.f32 %v917, %v930
    %v949 = vadd.f32 %v918, %v931
    %v950 = vadd.f32 %v919, %v932
    %v951 = vadd.f32 %v920, %v933
    %v952 = vadd.f32 %v921, %v934
    %v953 = vand.u32 2147483647, %v944
    %vm954 = vcmp.le.f32.partialorder %v953, 0.7853982
    %vm955 = vcmp.lt.s32.totalorder %v944, 0
    %v956 = vand.u32 %v944, 2139095040
    %v957 = vshrl.u32 %v956, 23
    %v958 = vsub.s32 %v957, 127
    %v959 = vand.u32 2147483647, %v944
    %v960 = vand.u32 %v959, 8388607
    %v961 = vor.u32 %v960, 8388608
    %v962 = vsub.s32 0, %v961
    %v963 = vadd.s32 %v958, 1
    %vm964 = vcmp.gt.s32.totalorder %v963, 0
    %v965 = vsel %vm964, %v963, 0
    %v966 = vshrl.u32 %v965, 5
    %v967 = vand.u32 %v965, 31
    %v968 = vsub.s32 32, %v967
    %v969 = vshrl.u32 683565275, %v968
    %v970 = vshll.u32 683565275, %v967
    %v971 = vshrl.u32 2475754826, %v968
    %v972 = vor.u32 %v970, %v971
    %v973 = vshll.u32 2475754826, %v967
    %v974 = vshrl.u32 2131351028, %v968
    %v975 = vor.u32 %v973, %v974
    %v976 = vshll.u32 2131351028, %v967
    %v977 = vshrl.u32 2102212464, %v968
    %v978 = vor.u32 %v976, %v977
    %v979 = vshll.u32 2102212464, %v967
    %v980 = vshrl.u32 920167782, %v968
    %v981 = vor.u32 %v979, %v980
    %v982 = vshll.u32 920167782, %v967
    %v983 = vshrl.u32 1326507024, %v968
    %v984 = vor.u32 %v982, %v983
    %vm985 = vcmp.lt.s32.totalorder %v966, 1
    %vm986 = vcmp.lt.s32.totalorder %v966, 2
    %vm987 = vcmp.lt.s32.totalorder %v966, 3
    %vm988 = vcmp.lt.s32.totalorder %v966, 4
    %v989 = vsel %vm985, %v969, %v972
    %v990 = vsel %vm988, %v978, 2102212464
    %v991 = vsel %vm987, %v975, %v990
    %v992 = vsel %vm986, %v989, %v991
    %v993 = vsel %vm985, %v972, %v975
    %v994 = vsel %vm988, %v981, 920167782
    %v995 = vsel %vm987, %v978, %v994
    %v996 = vsel %vm986, %v993, %v995
    %v997 = vsel %vm985, %v975, %v978
    %v998 = vsel %vm988, %v984, 1326507024
    %v999 = vsel %vm987, %v981, %v998
    %v1000 = vsel %vm986, %v997, %v999
    %v1001 = vshll.u32 %v961, 8
    %v1002 = vand.u32 %v1001, 65535
    %v1003 = vshrl.u32 %v1001, 16
    %v1004 = vand.u32 %v1000, 65535
    %v1005 = vshrl.u32 %v1000, 16
    %v1006 = vmul.u32 %v1002, %v1004
    %v1007 = vmul.u32 %v1002, %v1005
    %v1008 = vmul.u32 %v1003, %v1004
    %v1009 = vmul.u32 %v1003, %v1005
    %v1010 = vshll.u32 %v1007, 16
    %v1011 = vshrl.u32 %v1007, 16
    %v1012 = vshll.u32 %v1008, 16
    %v1013 = vshrl.u32 %v1008, 16
    %vm1014 = vc.u32 %v1006, %v1010
    %v1015 = vsel %vm1014, 1, 0
    %v1016 = vadd.s32 %v1006, %v1010
    %v1017 = vadd.s32 %v1009, %v1015
    %vm1018 = vc.u32 %v1016, %v1012
    %v1019 = vsel %vm1018, 1, 0
    %v1020 = vadd.s32 %v1016, %v1012
    %v1021 = vadd.s32 %v1017, %v1019
    %v1022 = vadd.s32 %v1021, %v1011
    %v1023 = vadd.s32 %v1022, %v1013
    %v1024 = vand.u32 %v1001, 65535
    %v1025 = vshrl.u32 %v1001, 16
    %v1026 = vand.u32 %v996, 65535
    %v1027 = vshrl.u32 %v996, 16
    %v1028 = vmul.u32 %v1024, %v1026
    %v1029 = vmul.u32 %v1024, %v1027
    %v1030 = vmul.u32 %v1025, %v1026
    %v1031 = vmul.u32 %v1025, %v1027
    %v1032 = vshll.u32 %v1029, 16
    %v1033 = vshrl.u32 %v1029, 16
    %v1034 = vshll.u32 %v1030, 16
    %v1035 = vshrl.u32 %v1030, 16
    %vm1036 = vc.u32 %v1028, %v1032
    %v1037 = vsel %vm1036, 1, 0
    %v1038 = vadd.s32 %v1028, %v1032
    %v1039 = vadd.s32 %v1031, %v1037
    %vm1040 = vc.u32 %v1038, %v1034
    %v1041 = vsel %vm1040, 1, 0
    %v1042 = vadd.s32 %v1038, %v1034
    %v1043 = vadd.s32 %v1039, %v1041
    %v1044 = vadd.s32 %v1043, %v1033
    %v1045 = vadd.s32 %v1044, %v1035
    %v1046 = vmul.u32 %v1001, %v992
    %v1047 = vadd.s32 %v1023, %v1042
    %vm1048 = vc.u32 %v1023, %v1042
    %v1049 = vadd.s32 %v1045, 1
    %v1050 = vsel %vm1048, %v1049, %v1045
    %v1051 = vadd.s32 %v1046, %v1050
    %v1052 = vadd.s32 %v1051, 536870912
    %v1053 = vshrl.u32 %v1052, 30
    %v1054 = vshll.u32 %v1053, 30
    %v1055 = vsub.s32 %v1051, %v1054
    %vm1056 = vcmp.lt.s32.totalorder %v1055, 0
    %v1057 = vsub.s32 0, %v1055
    %v1058 = vsel %vm1056, %v1057, %v1055
    %v1059 = vclz %v1058
    %v1060 = vsub.s32 %v1059, 2
    %vm1061 = vcmp.gt.s32.totalorder 0, %v1060
    %v1062 = vsel %vm1061, 0, %v1060
    %v1063 = vsub.s32 32, %v1062
    %v1064 = vshll.u32 %v1055, %v1062
    %v1065 = vshrl.u32 %v1047, %v1063
    %v1066 = vor.u32 %v1064, %v1065
    %v1067 = vsub.s32 4294967266, %v1062
    %v1068 = vadd.s32 %v1067, 127
    %v1069 = vshll.u32 %v1068, 23
    %v1070 = vor.u32 4788187, %v1069
    %v1071 = vand.u32 2147483647, %v1070
    %v1073 = vcvt.s32.f32 %v1066
    %v1074 = vmul.f32 %v1073, %v1071
    %v1075 = vxor.u32 %v1074, 2147483648
    %v1076 = vsel %vm955, %v1075, %v1074
    %v1077 = vsub.s32 4, %v1053
    %v1078 = vsel %vm955, %v1077, %v1053
    %v1079 = vsel %vm954, %v944, %v1076
    %v1080 = vsel %vm954, 0, %v1078
    %v1081 = vmul.f32 %v1079, %v1079
    %v1082 = vmul.f32 %v1081, -0.001358992
    %v1083 = vadd.f32 %v1082, 0.041655596
    %v1084 = vmul.f32 %v1081, %v1083
    %v1085 = vadd.f32 %v1084, -0.4999988
    %v1086 = vmul.f32 %v1081, %v1085
    %v1087 = vadd.f32 1.0, %v1086
    %v1088 = vmul.f32 %v1079, %v1079
    %v1089 = vmul.f32 %v1088, -0.00019511016
    %v1090 = vadd.f32 %v1089, 0.008332121
    %v1091 = vmul.f32 %v1088, %v1090
    %v1092 = vadd.f32 %v1091, -0.16666654
    %v1093 = vmul.f32 %v1088, %v1092
    %v1094 = vadd.f32 %v1093, 1.0
    %v1095 = vmul.f32 %v1094, %v1079
    %vm1096 = vweird.f32 %v944
    %v1097 = vadd.s32 %v1080, 3
    %v1098 = vand.u32 %v1097, 3
    %vm1099 = vcmp.lt.s32.totalorder %v1098, 2
    %vm1100 = vcmp.eq.s32.totalorder %v1098, 0
    %v1101 = vxor.u32 %v1095, 2147483648
    %v1102 = vsel %vm1100, %v1087, %v1101
    %vm1103 = vcmp.eq.s32.totalorder %v1098, 2
    %v1104 = vxor.u32 %v1087, 2147483648
    %v1105 = vsel %vm1103, %v1104, %v1095
    %v1106 = vsel %vm1099, %v1102, %v1105
    %v1107 = vsel %vm1096, nan, %v1106
    %v1108 = vand.u32 2147483647, %v945
    %vm1109 = vcmp.le.f32.partialorder %v1108, 0.7853982
    %vm1110 = vcmp.lt.s32.totalorder %v945, 0
    %v1111 = vand.u32 %v945, 2139095040
    %v1112 = vshrl.u32 %v1111, 23
    %v1113 = vsub.s32 %v1112, 127
    %v1114 = vand.u32 2147483647, %v945
    %v1115 = vand.u32 %v1114, 8388607
    %v1116 = vor.u32 %v1115, 8388608
    %v1117 = vsub.s32 0, %v1116
    %v1118 = vadd.s32 %v1113, 1
    %vm1119 = vcmp.gt.s32.totalorder %v1118, 0
    %v1120 = vsel %vm1119, %v1118, 0
    %v1121 = vshrl.u32 %v1120, 5
    %v1122 = vand.u32 %v1120, 31
    %v1123 = vsub.s32 32, %v1122
    %v1124 = vshrl.u32 683565275, %v1123
    %v1125 = vshll.u32 683565275, %v1122
    %v1126 = vshrl.u32 2475754826, %v1123
    %v1127 = vor.u32 %v1125, %v1126
    %v1128 = vshll.u32 2475754826, %v1122
    %v1129 = vshrl.u32 2131351028, %v1123
    %v1130 = vor.u32 %v1128, %v1129
    %v1131 = vshll.u32 2131351028, %v1122
    %v1132 = vshrl.u32 2102212464, %v1123
    %v1133 = vor.u32 %v1131, %v1132
    %v1134 = vshll.u32 2102212464, %v1122
    %v1135 = vshrl.u32 920167782, %v1123
    %v1136 = vor.u32 %v1134, %v1135
    %v1137 = vshll.u32 920167782, %v1122
    %v1138 = vshrl.u32 1326507024, %v1123
    %v1139 = vor.u32 %v1137, %v1138
    %vm1140 = vcmp.lt.s32.totalorder %v1121, 1
    %vm1141 = vcmp.lt.s32.totalorder %v1121, 2
    %vm1142 = vcmp.lt.s32.totalorder %v1121, 3
    %vm1143 = vcmp.lt.s32.totalorder %v1121, 4
    %v1144 = vsel %vm1140, %v1124, %v1127
    %v1145 = vsel %vm1143, %v1133, 2102212464
    %v1146 = vsel %vm1142, %v1130, %v1145
    %v1147 = vsel %vm1141, %v1144, %v1146
    %v1148 = vsel %vm1140, %v1127, %v1130
    %v1149 = vsel %vm1143, %v1136, 920167782
    %v1150 = vsel %vm1142, %v1133, %v1149
    %v1151 = vsel %vm1141, %v1148, %v1150
    %v1152 = vsel %vm1140, %v1130, %v1133
    %v1153 = vsel %vm1143, %v1139, 1326507024
    %v1154 = vsel %vm1142, %v1136, %v1153
    %v1155 = vsel %vm1141, %v1152, %v1154
    %v1156 = vshll.u32 %v1116, 8
    %v1157 = vand.u32 %v1156, 65535
    %v1158 = vshrl.u32 %v1156, 16
    %v1159 = vand.u32 %v1155, 65535
    %v1160 = vshrl.u32 %v1155, 16
    %v1161 = vmul.u32 %v1157, %v1159
    %v1162 = vmul.u32 %v1157, %v1160
    %v1163 = vmul.u32 %v1158, %v1159
    %v1164 = vmul.u32 %v1158, %v1160
    %v1165 = vshll.u32 %v1162, 16
    %v1166 = vshrl.u32 %v1162, 16
    %v1167 = vshll.u32 %v1163, 16
    %v1168 = vshrl.u32 %v1163, 16
    %vm1169 = vc.u32 %v1161, %v1165
    %v1170 = vsel %vm1169, 1, 0
    %v1171 = vadd.s32 %v1161, %v1165
    %v1172 = vadd.s32 %v1164, %v1170
    %vm1173 = vc.u32 %v1171, %v1167
    %v1174 = vsel %vm1173, 1, 0
    %v1175 = vadd.s32 %v1171, %v1167
    %v1176 = vadd.s32 %v1172, %v1174
    %v1177 = vadd.s32 %v1176, %v1166
    %v1178 = vadd.s32 %v1177, %v1168
    %v1179 = vand.u32 %v1156, 65535
    %v1180 = vshrl.u32 %v1156, 16
    %v1181 = vand.u32 %v1151, 65535
    %v1182 = vshrl.u32 %v1151, 16
    %v1183 = vmul.u32 %v1179, %v1181
    %v1184 = vmul.u32 %v1179, %v1182
    %v1185 = vmul.u32 %v1180, %v1181
    %v1186 = vmul.u32 %v1180, %v1182
    %v1187 = vshll.u32 %v1184, 16
    %v1188 = vshrl.u32 %v1184, 16
    %v1189 = vshll.u32 %v1185, 16
    %v1190 = vshrl.u32 %v1185, 16
    %vm1191 = vc.u32 %v1183, %v1187
    %v1192 = vsel %vm1191, 1, 0
    %v1193 = vadd.s32 %v1183, %v1187
    %v1194 = vadd.s32 %v1186, %v1192
    %vm1195 = vc.u32 %v1193, %v1189
    %v1196 = vsel %vm1195, 1, 0
    %v1197 = vadd.s32 %v1193, %v1189
    %v1198 = vadd.s32 %v1194, %v1196
    %v1199 = vadd.s32 %v1198, %v1188
    %v1200 = vadd.s32 %v1199, %v1190
    %v1201 = vmul.u32 %v1156, %v1147
    %v1202 = vadd.s32 %v1178, %v1197
    %vm1203 = vc.u32 %v1178, %v1197
    %v1204 = vadd.s32 %v1200, 1
    %v1205 = vsel %vm1203, %v1204, %v1200
    %v1206 = vadd.s32 %v1201, %v1205
    %v1207 = vadd.s32 %v1206, 536870912
    %v1208 = vshrl.u32 %v1207, 30
    %v1209 = vshll.u32 %v1208, 30
    %v1210 = vsub.s32 %v1206, %v1209
    %vm1211 = vcmp.lt.s32.totalorder %v1210, 0
    %v1212 = vsub.s32 0, %v1210
    %v1213 = vsel %vm1211, %v1212, %v1210
    %v1214 = vclz %v1213
    %v1215 = vsub.s32 %v1214, 2
    %vm1216 = vcmp.gt.s32.totalorder 0, %v1215
    %v1217 = vsel %vm1216, 0, %v1215
    %v1218 = vsub.s32 32, %v1217
    %v1219 = vshll.u32 %v1210, %v1217
    %v1220 = vshrl.u32 %v1202, %v1218
    %v1221 = vor.u32 %v1219, %v1220
    %v1222 = vsub.s32 4294967266, %v1217
    %v1223 = vadd.s32 %v1222, 127
    %v1224 = vshll.u32 %v1223, 23
    %v1225 = vor.u32 4788187, %v1224
    %v1226 = vand.u32 2147483647, %v1225
    %v1228 = vcvt.s32.f32 %v1221
    %v1229 = vmul.f32 %v1228, %v1226
    %v1230 = vxor.u32 %v1229, 2147483648
    %v1231 = vsel %vm1110, %v1230, %v1229
    %v1232 = vsub.s32 4, %v1208
    %v1233 = vsel %vm1110, %v1232, %v1208
    %v1234 = vsel %vm1109, %v945, %v1231
    %v1235 = vsel %vm1109, 0, %v1233
    %v1236 = vmul.f32 %v1234, %v1234
    %v1237 = vmul.f32 %v1236, -0.001358992
    %v1238 = vadd.f32 %v1237, 0.041655596
    %v1239 = vmul.f32 %v1236, %v1238
    %v1240 = vadd.f32 %v1239, -0.4999988
    %v1241 = vmul.f32 %v1236, %v1240
    %v1242 = vadd.f32 1.0, %v1241
    %v1243 = vmul.f32 %v1234, %v1234
    %v1244 = vmul.f32 %v1243, -0.00019511016
    %v1245 = vadd.f32 %v1244, 0.008332121
    %v1246 = vmul.f32 %v1243, %v1245
    %v1247 = vadd.f32 %v1246, -0.16666654
    %v1248 = vmul.f32 %v1243, %v1247
    %v1249 = vadd.f32 %v1248, 1.0
    %v1250 = vmul.f32 %v1249, %v1234
    %vm1251 = vweird.f32 %v945
    %v1252 = vadd.s32 %v1235, 3
    %v1253 = vand.u32 %v1252, 3
    %vm1254 = vcmp.lt.s32.totalorder %v1253, 2
    %vm1255 = vcmp.eq.s32.totalorder %v1253, 0
    %v1256 = vxor.u32 %v1250, 2147483648
    %v1257 = vsel %vm1255, %v1242, %v1256
    %vm1258 = vcmp.eq.s32.totalorder %v1253, 2
    %v1259 = vxor.u32 %v1242, 2147483648
    %v1260 = vsel %vm1258, %v1259, %v1250
    %v1261 = vsel %vm1254, %v1257, %v1260
    %v1262 = vsel %vm1251, nan, %v1261
    %v1263 = vand.u32 2147483647, %v946
    %vm1264 = vcmp.le.f32.partialorder %v1263, 0.7853982
    %vm1265 = vcmp.lt.s32.totalorder %v946, 0
    %v1266 = vand.u32 %v946, 2139095040
    %v1267 = vshrl.u32 %v1266, 23
    %v1268 = vsub.s32 %v1267, 127
    %v1269 = vand.u32 2147483647, %v946
    %v1270 = vand.u32 %v1269, 8388607
    %v1271 = vor.u32 %v1270, 8388608
    %v1272 = vsub.s32 0, %v1271
    %v1273 = vadd.s32 %v1268, 1
    %vm1274 = vcmp.gt.s32.totalorder %v1273, 0
    %v1275 = vsel %vm1274, %v1273, 0
    %v1276 = vshrl.u32 %v1275, 5
    %v1277 = vand.u32 %v1275, 31
    %v1278 = vsub.s32 32, %v1277
    %v1279 = vshrl.u32 683565275, %v1278
    %v1280 = vshll.u32 683565275, %v1277
    %v1281 = vshrl.u32 2475754826, %v1278
    %v1282 = vor.u32 %v1280, %v1281
    %v1283 = vshll.u32 2475754826, %v1277
    %v1284 = vshrl.u32 2131351028, %v1278
    %v1285 = vor.u32 %v1283, %v1284
    %v1286 = vshll.u32 2131351028, %v1277
    %v1287 = vshrl.u32 2102212464, %v1278
    %v1288 = vor.u32 %v1286, %v1287
    %v1289 = vshll.u32 2102212464, %v1277
    %v1290 = vshrl.u32 920167782, %v1278
    %v1291 = vor.u32 %v1289, %v1290
    %v1292 = vshll.u32 920167782, %v1277
    %v1293 = vshrl.u32 1326507024, %v1278
    %v1294 = vor.u32 %v1292, %v1293
    %vm1295 = vcmp.lt.s32.totalorder %v1276, 1
    %vm1296 = vcmp.lt.s32.totalorder %v1276, 2
    %vm1297 = vcmp.lt.s32.totalorder %v1276, 3
    %vm1298 = vcmp.lt.s32.totalorder %v1276, 4
    %v1299 = vsel %vm1295, %v1279, %v1282
    %v1300 = vsel %vm1298, %v1288, 2102212464
    %v1301 = vsel %vm1297, %v1285, %v1300
    %v1302 = vsel %vm1296, %v1299, %v1301
    %v1303 = vsel %vm1295, %v1282, %v1285
    %v1304 = vsel %vm1298, %v1291, 920167782
    %v1305 = vsel %vm1297, %v1288, %v1304
    %v1306 = vsel %vm1296, %v1303, %v1305
    %v1307 = vsel %vm1295, %v1285, %v1288
    %v1308 = vsel %vm1298, %v1294, 1326507024
    %v1309 = vsel %vm1297, %v1291, %v1308
    %v1310 = vsel %vm1296, %v1307, %v1309
    %v1311 = vshll.u32 %v1271, 8
    %v1312 = vand.u32 %v1311, 65535
    %v1313 = vshrl.u32 %v1311, 16
    %v1314 = vand.u32 %v1310, 65535
    %v1315 = vshrl.u32 %v1310, 16
    %v1316 = vmul.u32 %v1312, %v1314
    %v1317 = vmul.u32 %v1312, %v1315
    %v1318 = vmul.u32 %v1313, %v1314
    %v1319 = vmul.u32 %v1313, %v1315
    %v1320 = vshll.u32 %v1317, 16
    %v1321 = vshrl.u32 %v1317, 16
    %v1322 = vshll.u32 %v1318, 16
    %v1323 = vshrl.u32 %v1318, 16
    %vm1324 = vc.u32 %v1316, %v1320
    %v1325 = vsel %vm1324, 1, 0
    %v1326 = vadd.s32 %v1316, %v1320
    %v1327 = vadd.s32 %v1319, %v1325
    %vm1328 = vc.u32 %v1326, %v1322
    %v1329 = vsel %vm1328, 1, 0
    %v1330 = vadd.s32 %v1326, %v1322
    %v1331 = vadd.s32 %v1327, %v1329
    %v1332 = vadd.s32 %v1331, %v1321
    %v1333 = vadd.s32 %v1332, %v1323
    %v1334 = vand.u32 %v1311, 65535
    %v1335 = vshrl.u32 %v1311, 16
    %v1336 = vand.u32 %v1306, 65535
    %v1337 = vshrl.u32 %v1306, 16
    %v1338 = vmul.u32 %v1334, %v1336
    %v1339 = vmul.u32 %v1334, %v1337
    %v1340 = vmul.u32 %v1335, %v1336
    %v1341 = vmul.u32 %v1335, %v1337
    %v1342 = vshll.u32 %v1339, 16
    %v1343 = vshrl.u32 %v1339, 16
    %v1344 = vshll.u32 %v1340, 16
    %v1345 = vshrl.u32 %v1340, 16
    %vm1346 = vc.u32 %v1338, %v1342
    %v1347 = vsel %vm1346, 1, 0
    %v1348 = vadd.s32 %v1338, %v1342
    %v1349 = vadd.s32 %v1341, %v1347
    %vm1350 = vc.u32 %v1348, %v1344
    %v1351 = vsel %vm1350, 1, 0
    %v1352 = vadd.s32 %v1348, %v1344
    %v1353 = vadd.s32 %v1349, %v1351
    %v1354 = vadd.s32 %v1353, %v1343
    %v1355 = vadd.s32 %v1354, %v1345
    %v1356 = vmul.u32 %v1311, %v1302
    %v1357 = vadd.s32 %v1333, %v1352
    %vm1358 = vc.u32 %v1333, %v1352
    %v1359 = vadd.s32 %v1355, 1
    %v1360 = vsel %vm1358, %v1359, %v1355
    %v1361 = vadd.s32 %v1356, %v1360
    %v1362 = vadd.s32 %v1361, 536870912
    %v1363 = vshrl.u32 %v1362, 30
    %v1364 = vshll.u32 %v1363, 30
    %v1365 = vsub.s32 %v1361, %v1364
    %vm1366 = vcmp.lt.s32.totalorder %v1365, 0
    %v1367 = vsub.s32 0, %v1365
    %v1368 = vsel %vm1366, %v1367, %v1365
    %v1369 = vclz %v1368
    %v1370 = vsub.s32 %v1369, 2
    %vm1371 = vcmp.gt.s32.totalorder 0, %v1370
    %v1372 = vsel %vm1371, 0, %v1370
    %v1373 = vsub.s32 32, %v1372
    %v1374 = vshll.u32 %v1365, %v1372
    %v1375 = vshrl.u32 %v1357, %v1373
    %v1376 = vor.u32 %v1374, %v1375
    %v1377 = vsub.s32 4294967266, %v1372
    %v1378 = vadd.s32 %v1377, 127
    %v1379 = vshll.u32 %v1378, 23
    %v1380 = vor.u32 4788187, %v1379
    %v1381 = vand.u32 2147483647, %v1380
    %v1383 = vcvt.s32.f32 %v1376
    %v1384 = vmul.f32 %v1383, %v1381
    %v1385 = vxor.u32 %v1384, 2147483648
    %v1386 = vsel %vm1265, %v1385, %v1384
    %v1387 = vsub.s32 4, %v1363
    %v1388 = vsel %vm1265, %v1387, %v1363
    %v1389 = vsel %vm1264, %v946, %v1386
    %v1390 = vsel %vm1264, 0, %v1388
    %v1391 = vmul.f32 %v1389, %v1389
    %v1392 = vmul.f32 %v1391, -0.001358992
    %v1393 = vadd.f32 %v1392, 0.041655596
    %v1394 = vmul.f32 %v1391, %v1393
    %v1395 = vadd.f32 %v1394, -0.4999988
    %v1396 = vmul.f32 %v1391, %v1395
    %v1397 = vadd.f32 1.0, %v1396
    %v1398 = vmul.f32 %v1389, %v1389
    %v1399 = vmul.f32 %v1398, -0.00019511016
    %v1400 = vadd.f32 %v1399, 0.008332121
    %v1401 = vmul.f32 %v1398, %v1400
    %v1402 = vadd.f32 %v1401, -0.16666654
    %v1403 = vmul.f32 %v1398, %v1402
    %v1404 = vadd.f32 %v1403, 1.0
    %v1405 = vmul.f32 %v1404, %v1389
    %vm1406 = vweird.f32 %v946
    %v1407 = vadd.s32 %v1390, 3
    %v1408 = vand.u32 %v1407, 3
    %vm1409 = vcmp.lt.s32.totalorder %v1408, 2
    %vm1410 = vcmp.eq.s32.totalorder %v1408, 0
    %v1411 = vxor.u32 %v1405, 2147483648
    %v1412 = vsel %vm1410, %v1397, %v1411
    %vm1413 = vcmp.eq.s32.totalorder %v1408, 2
    %v1414 = vxor.u32 %v1397, 2147483648
    %v1415 = vsel %vm1413, %v1414, %v1405
    %v1416 = vsel %vm1409, %v1412, %v1415
    %v1417 = vsel %vm1406, nan, %v1416
    %v1418 = vand.u32 2147483647, %v947
    %vm1419 = vcmp.le.f32.partialorder %v1418, 0.7853982
    %vm1420 = vcmp.lt.s32.totalorder %v947, 0
    %v1421 = vand.u32 %v947, 2139095040
    %v1422 = vshrl.u32 %v1421, 23
    %v1423 = vsub.s32 %v1422, 127
    %v1424 = vand.u32 2147483647, %v947
    %v1425 = vand.u32 %v1424, 8388607
    %v1426 = vor.u32 %v1425, 8388608
    %v1427 = vsub.s32 0, %v1426
    %v1428 = vadd.s32 %v1423, 1
    %vm1429 = vcmp.gt.s32.totalorder %v1428, 0
    %v1430 = vsel %vm1429, %v1428, 0
    %v1431 = vshrl.u32 %v1430, 5
    %v1432 = vand.u32 %v1430, 31
    %v1433 = vsub.s32 32, %v1432
    %v1434 = vshrl.u32 683565275, %v1433
    %v1435 = vshll.u32 683565275, %v1432
    %v1436 = vshrl.u32 2475754826, %v1433
    %v1437 = vor.u32 %v1435, %v1436
    %v1438 = vshll.u32 2475754826, %v1432
    %v1439 = vshrl.u32 2131351028, %v1433
    %v1440 = vor.u32 %v1438, %v1439
    %v1441 = vshll.u32 2131351028, %v1432
    %v1442 = vshrl.u32 2102212464, %v1433
    %v1443 = vor.u32 %v1441, %v1442
    %v1444 = vshll.u32 2102212464, %v1432
    %v1445 = vshrl.u32 920167782, %v1433
    %v1446 = vor.u32 %v1444, %v1445
    %v1447 = vshll.u32 920167782, %v1432
    %v1448 = vshrl.u32 1326507024, %v1433
    %v1449 = vor.u32 %v1447, %v1448
    %vm1450 = vcmp.lt.s32.totalorder %v1431, 1
    %vm1451 = vcmp.lt.s32.totalorder %v1431, 2
    %vm1452 = vcmp.lt.s32.totalorder %v1431, 3
    %vm1453 = vcmp.lt.s32.totalorder %v1431, 4
    %v1454 = vsel %vm1450, %v1434, %v1437
    %v1455 = vsel %vm1453, %v1443, 2102212464
    %v1456 = vsel %vm1452, %v1440, %v1455
    %v1457 = vsel %vm1451, %v1454, %v1456
    %v1458 = vsel %vm1450, %v1437, %v1440
    %v1459 = vsel %vm1453, %v1446, 920167782
    %v1460 = vsel %vm1452, %v1443, %v1459
    %v1461 = vsel %vm1451, %v1458, %v1460
    %v1462 = vsel %vm1450, %v1440, %v1443
    %v1463 = vsel %vm1453, %v1449, 1326507024
    %v1464 = vsel %vm1452, %v1446, %v1463
    %v1465 = vsel %vm1451, %v1462, %v1464
    %v1466 = vshll.u32 %v1426, 8
    %v1467 = vand.u32 %v1466, 65535
    %v1468 = vshrl.u32 %v1466, 16
    %v1469 = vand.u32 %v1465, 65535
    %v1470 = vshrl.u32 %v1465, 16
    %v1471 = vmul.u32 %v1467, %v1469
    %v1472 = vmul.u32 %v1467, %v1470
    %v1473 = vmul.u32 %v1468, %v1469
    %v1474 = vmul.u32 %v1468, %v1470
    %v1475 = vshll.u32 %v1472, 16
    %v1476 = vshrl.u32 %v1472, 16
    %v1477 = vshll.u32 %v1473, 16
    %v1478 = vshrl.u32 %v1473, 16
    %vm1479 = vc.u32 %v1471, %v1475
    %v1480 = vsel %vm1479, 1, 0
    %v1481 = vadd.s32 %v1471, %v1475
    %v1482 = vadd.s32 %v1474, %v1480
    %vm1483 = vc.u32 %v1481, %v1477
    %v1484 = vsel %vm1483, 1, 0
    %v1485 = vadd.s32 %v1481, %v1477
    %v1486 = vadd.s32 %v1482, %v1484
    %v1487 = vadd.s32 %v1486, %v1476
    %v1488 = vadd.s32 %v1487, %v1478
    %v1489 = vand.u32 %v1466, 65535
    %v1490 = vshrl.u32 %v1466, 16
    %v1491 = vand.u32 %v1461, 65535
    %v1492 = vshrl.u32 %v1461, 16
    %v1493 = vmul.u32 %v1489, %v1491
    %v1494 = vmul.u32 %v1489, %v1492
    %v1495 = vmul.u32 %v1490, %v1491
    %v1496 = vmul.u32 %v1490, %v1492
    %v1497 = vshll.u32 %v1494, 16
    %v1498 = vshrl.u32 %v1494, 16
    %v1499 = vshll.u32 %v1495, 16
    %v1500 = vshrl.u32 %v1495, 16
    %vm1501 = vc.u32 %v1493, %v1497
    %v1502 = vsel %vm1501, 1, 0
    %v1503 = vadd.s32 %v1493, %v1497
    %v1504 = vadd.s32 %v1496, %v1502
    %vm1505 = vc.u32 %v1503, %v1499
    %v1506 = vsel %vm1505, 1, 0
    %v1507 = vadd.s32 %v1503, %v1499
    %v1508 = vadd.s32 %v1504, %v1506
    %v1509 = vadd.s32 %v1508, %v1498
    %v1510 = vadd.s32 %v1509, %v1500
    %v1511 = vmul.u32 %v1466, %v1457
    %v1512 = vadd.s32 %v1488, %v1507
    %vm1513 = vc.u32 %v1488, %v1507
    %v1514 = vadd.s32 %v1510, 1
    %v1515 = vsel %vm1513, %v1514, %v1510
    %v1516 = vadd.s32 %v1511, %v1515
    %v1517 = vadd.s32 %v1516, 536870912
    %v1518 = vshrl.u32 %v1517, 30
    %v1519 = vshll.u32 %v1518, 30
    %v1520 = vsub.s32 %v1516, %v1519
    %vm1521 = vcmp.lt.s32.totalorder %v1520, 0
    %v1522 = vsub.s32 0, %v1520
    %v1523 = vsel %vm1521, %v1522, %v1520
    %v1524 = vclz %v1523
    %v1525 = vsub.s32 %v1524, 2
    %vm1526 = vcmp.gt.s32.totalorder 0, %v1525
    %v1527 = vsel %vm1526, 0, %v1525
    %v1528 = vsub.s32 32, %v1527
    %v1529 = vshll.u32 %v1520, %v1527
    %v1530 = vshrl.u32 %v1512, %v1528
    %v1531 = vor.u32 %v1529, %v1530
    %v1532 = vsub.s32 4294967266, %v1527
    %v1533 = vadd.s32 %v1532, 127
    %v1534 = vshll.u32 %v1533, 23
    %v1535 = vor.u32 4788187, %v1534
    %v1536 = vand.u32 2147483647, %v1535
    %v1538 = vcvt.s32.f32 %v1531
    %v1539 = vmul.f32 %v1538, %v1536
    %v1540 = vxor.u32 %v1539, 2147483648
    %v1541 = vsel %vm1420, %v1540, %v1539
    %v1542 = vsub.s32 4, %v1518
    %v1543 = vsel %vm1420, %v1542, %v1518
    %v1544 = vsel %vm1419, %v947, %v1541
    %v1545 = vsel %vm1419, 0, %v1543
    %v1546 = vmul.f32 %v1544, %v1544
    %v1547 = vmul.f32 %v1546, -0.001358992
    %v1548 = vadd.f32 %v1547, 0.041655596
    %v1549 = vmul.f32 %v1546, %v1548
    %v1550 = vadd.f32 %v1549, -0.4999988
    %v1551 = vmul.f32 %v1546, %v1550
    %v1552 = vadd.f32 1.0, %v1551
    %v1553 = vmul.f32 %v1544, %v1544
    %v1554 = vmul.f32 %v1553, -0.00019511016
    %v1555 = vadd.f32 %v1554, 0.008332121
    %v1556 = vmul.f32 %v1553, %v1555
    %v1557 = vadd.f32 %v1556, -0.16666654
    %v1558 = vmul.f32 %v1553, %v1557
    %v1559 = vadd.f32 %v1558, 1.0
    %v1560 = vmul.f32 %v1559, %v1544
    %vm1561 = vweird.f32 %v947
    %v1562 = vadd.s32 %v1545, 3
    %v1563 = vand.u32 %v1562, 3
    %vm1564 = vcmp.lt.s32.totalorder %v1563, 2
    %vm1565 = vcmp.eq.s32.totalorder %v1563, 0
    %v1566 = vxor.u32 %v1560, 2147483648
    %v1567 = vsel %vm1565, %v1552, %v1566
    %vm1568 = vcmp.eq.s32.totalorder %v1563, 2
    %v1569 = vxor.u32 %v1552, 2147483648
    %v1570 = vsel %vm1568, %v1569, %v1560
    %v1571 = vsel %vm1564, %v1567, %v1570
    %v1572 = vsel %vm1561, nan, %v1571
    %v1573 = vand.u32 2147483647, %v948
    %vm1574 = vcmp.le.f32.partialorder %v1573, 0.7853982
    %vm1575 = vcmp.lt.s32.totalorder %v948, 0
    %v1576 = vand.u32 %v948, 2139095040
    %v1577 = vshrl.u32 %v1576, 23
    %v1578 = vsub.s32 %v1577, 127
    %v1579 = vand.u32 2147483647, %v948
    %v1580 = vand.u32 %v1579, 8388607
    %v1581 = vor.u32 %v1580, 8388608
    %v1582 = vsub.s32 0, %v1581
    %v1583 = vadd.s32 %v1578, 1
    %vm1584 = vcmp.gt.s32.totalorder %v1583, 0
    %v1585 = vsel %vm1584, %v1583, 0
    %v1586 = vshrl.u32 %v1585, 5
    %v1587 = vand.u32 %v1585, 31
    %v1588 = vsub.s32 32, %v1587
    %v1589 = vshrl.u32 683565275, %v1588
    %v1590 = vshll.u32 683565275, %v1587
    %v1591 = vshrl.u32 2475754826, %v1588
    %v1592 = vor.u32 %v1590, %v1591
    %v1593 = vshll.u32 2475754826, %v1587
    %v1594 = vshrl.u32 2131351028, %v1588
    %v1595 = vor.u32 %v1593, %v1594
    %v1596 = vshll.u32 2131351028, %v1587
    %v1597 = vshrl.u32 2102212464, %v1588
    %v1598 = vor.u32 %v1596, %v1597
    %v1599 = vshll.u32 2102212464, %v1587
    %v1600 = vshrl.u32 920167782, %v1588
    %v1601 = vor.u32 %v1599, %v1600
    %v1602 = vshll.u32 920167782, %v1587
    %v1603 = vshrl.u32 1326507024, %v1588
    %v1604 = vor.u32 %v1602, %v1603
    %vm1605 = vcmp.lt.s32.totalorder %v1586, 1
    %vm1606 = vcmp.lt.s32.totalorder %v1586, 2
    %vm1607 = vcmp.lt.s32.totalorder %v1586, 3
    %vm1608 = vcmp.lt.s32.totalorder %v1586, 4
    %v1609 = vsel %vm1605, %v1589, %v1592
    %v1610 = vsel %vm1608, %v1598, 2102212464
    %v1611 = vsel %vm1607, %v1595, %v1610
    %v1612 = vsel %vm1606, %v1609, %v1611
    %v1613 = vsel %vm1605, %v1592, %v1595
    %v1614 = vsel %vm1608, %v1601, 920167782
    %v1615 = vsel %vm1607, %v1598, %v1614
    %v1616 = vsel %vm1606, %v1613, %v1615
    %v1617 = vsel %vm1605, %v1595, %v1598
    %v1618 = vsel %vm1608, %v1604, 1326507024
    %v1619 = vsel %vm1607, %v1601, %v1618
    %v1620 = vsel %vm1606, %v1617, %v1619
    %v1621 = vshll.u32 %v1581, 8
    %v1622 = vand.u32 %v1621, 65535
    %v1623 = vshrl.u32 %v1621, 16
    %v1624 = vand.u32 %v1620, 65535
    %v1625 = vshrl.u32 %v1620, 16
    %v1626 = vmul.u32 %v1622, %v1624
    %v1627 = vmul.u32 %v1622, %v1625
    %v1628 = vmul.u32 %v1623, %v1624
    %v1629 = vmul.u32 %v1623, %v1625
    %v1630 = vshll.u32 %v1627, 16
    %v1631 = vshrl.u32 %v1627, 16
    %v1632 = vshll.u32 %v1628, 16
    %v1633 = vshrl.u32 %v1628, 16
    %vm1634 = vc.u32 %v1626, %v1630
    %v1635 = vsel %vm1634, 1, 0
    %v1636 = vadd.s32 %v1626, %v1630
    %v1637 = vadd.s32 %v1629, %v1635
    %vm1638 = vc.u32 %v1636, %v1632
    %v1639 = vsel %vm1638, 1, 0
    %v1640 = vadd.s32 %v1636, %v1632
    %v1641 = vadd.s32 %v1637, %v1639
    %v1642 = vadd.s32 %v1641, %v1631
    %v1643 = vadd.s32 %v1642, %v1633
    %v1644 = vand.u32 %v1621, 65535
    %v1645 = vshrl.u32 %v1621, 16
    %v1646 = vand.u32 %v1616, 65535
    %v1647 = vshrl.u32 %v1616, 16
    %v1648 = vmul.u32 %v1644, %v1646
    %v1649 = vmul.u32 %v1644, %v1647
    %v1650 = vmul.u32 %v1645, %v1646
    %v1651 = vmul.u32 %v1645, %v1647
    %v1652 = vshll.u32 %v1649, 16
    %v1653 = vshrl.u32 %v1649, 16
    %v1654 = vshll.u32 %v1650, 16
    %v1655 = vshrl.u32 %v1650, 16
    %vm1656 = vc.u32 %v1648, %v1652
    %v1657 = vsel %vm1656, 1, 0
    %v1658 = vadd.s32 %v1648, %v1652
    %v1659 = vadd.s32 %v1651, %v1657
    %vm1660 = vc.u32 %v1658, %v1654
    %v1661 = vsel %vm1660, 1, 0
    %v1662 = vadd.s32 %v1658, %v1654
    %v1663 = vadd.s32 %v1659, %v1661
    %v1664 = vadd.s32 %v1663, %v1653
    %v1665 = vadd.s32 %v1664, %v1655
    %v1666 = vmul.u32 %v1621, %v1612
    %v1667 = vadd.s32 %v1643, %v1662
    %vm1668 = vc.u32 %v1643, %v1662
    %v1669 = vadd.s32 %v1665, 1
    %v1670 = vsel %vm1668, %v1669, %v1665
    %v1671 = vadd.s32 %v1666, %v1670
    %v1672 = vadd.s32 %v1671, 536870912
    %v1673 = vshrl.u32 %v1672, 30
    %v1674 = vshll.u32 %v1673, 30
    %v1675 = vsub.s32 %v1671, %v1674
    %vm1676 = vcmp.lt.s32.totalorder %v1675, 0
    %v1677 = vsub.s32 0, %v1675
    %v1678 = vsel %vm1676, %v1677, %v1675
    %v1679 = vclz %v1678
    %v1680 = vsub.s32 %v1679, 2
    %vm1681 = vcmp.gt.s32.totalorder 0, %v1680
    %v1682 = vsel %vm1681, 0, %v1680
    %v1683 = vsub.s32 32, %v1682
    %v1684 = vshll.u32 %v1675, %v1682
    %v1685 = vshrl.u32 %v1667, %v1683
    %v1686 = vor.u32 %v1684, %v1685
    %v1687 = vsub.s32 4294967266, %v1682
    %v1688 = vadd.s32 %v1687, 127
    %v1689 = vshll.u32 %v1688, 23
    %v1690 = vor.u32 4788187, %v1689
    %v1691 = vand.u32 2147483647, %v1690
    %v1693 = vcvt.s32.f32 %v1686
    %v1694 = vmul.f32 %v1693, %v1691
    %v1695 = vxor.u32 %v1694, 2147483648
    %v1696 = vsel %vm1575, %v1695, %v1694
    %v1697 = vsub.s32 4, %v1673
    %v1698 = vsel %vm1575, %v1697, %v1673
    %v1699 = vsel %vm1574, %v948, %v1696
    %v1700 = vsel %vm1574, 0, %v1698
    %v1701 = vmul.f32 %v1699, %v1699
    %v1702 = vmul.f32 %v1701, -0.001358992
    %v1703 = vadd.f32 %v1702, 0.041655596
    %v1704 = vmul.f32 %v1701, %v1703
    %v1705 = vadd.f32 %v1704, -0.4999988
    %v1706 = vmul.f32 %v1701, %v1705
    %v1707 = vadd.f32 1.0, %v1706
    %v1708 = vmul.f32 %v1699, %v1699
    %v1709 = vmul.f32 %v1708, -0.00019511016
    %v1710 = vadd.f32 %v1709, 0.008332121
    %v1711 = vmul.f32 %v1708, %v1710
    %v1712 = vadd.f32 %v1711, -0.16666654
    %v1713 = vmul.f32 %v1708, %v1712
    %v1714 = vadd.f32 %v1713, 1.0
    %v1715 = vmul.f32 %v1714, %v1699
    %vm1716 = vweird.f32 %v948
    %v1717 = vadd.s32 %v1700, 3
    %v1718 = vand.u32 %v1717, 3
    %vm1719 = vcmp.lt.s32.totalorder %v1718, 2
    %vm1720 = vcmp.eq.s32.totalorder %v1718, 0
    %v1721 = vxor.u32 %v1715, 2147483648
    %v1722 = vsel %vm1720, %v1707, %v1721
    %vm1723 = vcmp.eq.s32.totalorder %v1718, 2
    %v1724 = vxor.u32 %v1707, 2147483648
    %v1725 = vsel %vm1723, %v1724, %v1715
    %v1726 = vsel %vm1719, %v1722, %v1725
    %v1727 = vsel %vm1716, nan, %v1726
    %v1728 = vand.u32 2147483647, %v949
    %vm1729 = vcmp.le.f32.partialorder %v1728, 0.7853982
    %vm1730 = vcmp.lt.s32.totalorder %v949, 0
    %v1731 = vand.u32 %v949, 2139095040
    %v1732 = vshrl.u32 %v1731, 23
    %v1733 = vsub.s32 %v1732, 127
    %v1734 = vand.u32 2147483647, %v949
    %v1735 = vand.u32 %v1734, 8388607
    %v1736 = vor.u32 %v1735, 8388608
    %v1737 = vsub.s32 0, %v1736
    %v1738 = vadd.s32 %v1733, 1
    %vm1739 = vcmp.gt.s32.totalorder %v1738, 0
    %v1740 = vsel %vm1739, %v1738, 0
    %v1741 = vshrl.u32 %v1740, 5
    %v1742 = vand.u32 %v1740, 31
    %v1743 = vsub.s32 32, %v1742
    %v1744 = vshrl.u32 683565275, %v1743
    %v1745 = vshll.u32 683565275, %v1742
    %v1746 = vshrl.u32 2475754826, %v1743
    %v1747 = vor.u32 %v1745, %v1746
    %v1748 = vshll.u32 2475754826, %v1742
    %v1749 = vshrl.u32 2131351028, %v1743
    %v1750 = vor.u32 %v1748, %v1749
    %v1751 = vshll.u32 2131351028, %v1742
    %v1752 = vshrl.u32 2102212464, %v1743
    %v1753 = vor.u32 %v1751, %v1752
    %v1754 = vshll.u32 2102212464, %v1742
    %v1755 = vshrl.u32 920167782, %v1743
    %v1756 = vor.u32 %v1754, %v1755
    %v1757 = vshll.u32 920167782, %v1742
    %v1758 = vshrl.u32 1326507024, %v1743
    %v1759 = vor.u32 %v1757, %v1758
    %vm1760 = vcmp.lt.s32.totalorder %v1741, 1
    %vm1761 = vcmp.lt.s32.totalorder %v1741, 2
    %vm1762 = vcmp.lt.s32.totalorder %v1741, 3
    %vm1763 = vcmp.lt.s32.totalorder %v1741, 4
    %v1764 = vsel %vm1760, %v1744, %v1747
    %v1765 = vsel %vm1763, %v1753, 2102212464
    %v1766 = vsel %vm1762, %v1750, %v1765
    %v1767 = vsel %vm1761, %v1764, %v1766
    %v1768 = vsel %vm1760, %v1747, %v1750
    %v1769 = vsel %vm1763, %v1756, 920167782
    %v1770 = vsel %vm1762, %v1753, %v1769
    %v1771 = vsel %vm1761, %v1768, %v1770
    %v1772 = vsel %vm1760, %v1750, %v1753
    %v1773 = vsel %vm1763, %v1759, 1326507024
    %v1774 = vsel %vm1762, %v1756, %v1773
    %v1775 = vsel %vm1761, %v1772, %v1774
    %v1776 = vshll.u32 %v1736, 8
    %v1777 = vand.u32 %v1776, 65535
    %v1778 = vshrl.u32 %v1776, 16
    %v1779 = vand.u32 %v1775, 65535
    %v1780 = vshrl.u32 %v1775, 16
    %v1781 = vmul.u32 %v1777, %v1779
    %v1782 = vmul.u32 %v1777, %v1780
    %v1783 = vmul.u32 %v1778, %v1779
    %v1784 = vmul.u32 %v1778, %v1780
    %v1785 = vshll.u32 %v1782, 16
    %v1786 = vshrl.u32 %v1782, 16
    %v1787 = vshll.u32 %v1783, 16
    %v1788 = vshrl.u32 %v1783, 16
    %vm1789 = vc.u32 %v1781, %v1785
    %v1790 = vsel %vm1789, 1, 0
    %v1791 = vadd.s32 %v1781, %v1785
    %v1792 = vadd.s32 %v1784, %v1790
    %vm1793 = vc.u32 %v1791, %v1787
    %v1794 = vsel %vm1793, 1, 0
    %v1795 = vadd.s32 %v1791, %v1787
    %v1796 = vadd.s32 %v1792, %v1794
    %v1797 = vadd.s32 %v1796, %v1786
    %v1798 = vadd.s32 %v1797, %v1788
    %v1799 = vand.u32 %v1776, 65535
    %v1800 = vshrl.u32 %v1776, 16
    %v1801 = vand.u32 %v1771, 65535
    %v1802 = vshrl.u32 %v1771, 16
    %v1803 = vmul.u32 %v1799, %v1801
    %v1804 = vmul.u32 %v1799, %v1802
    %v1805 = vmul.u32 %v1800, %v1801
    %v1806 = vmul.u32 %v1800, %v1802
    %v1807 = vshll.u32 %v1804, 16
    %v1808 = vshrl.u32 %v1804, 16
    %v1809 = vshll.u32 %v1805, 16
    %v1810 = vshrl.u32 %v1805, 16
    %vm1811 = vc.u32 %v1803, %v1807
    %v1812 = vsel %vm1811, 1, 0
    %v1813 = vadd.s32 %v1803, %v1807
    %v1814 = vadd.s32 %v1806, %v1812
    %vm1815 = vc.u32 %v1813, %v1809
    %v1816 = vsel %vm1815, 1, 0
    %v1817 = vadd.s32 %v1813, %v1809
    %v1818 = vadd.s32 %v1814, %v1816
    %v1819 = vadd.s32 %v1818, %v1808
    %v1820 = vadd.s32 %v1819, %v1810
    %v1821 = vmul.u32 %v1776, %v1767
    %v1822 = vadd.s32 %v1798, %v1817
    %vm1823 = vc.u32 %v1798, %v1817
    %v1824 = vadd.s32 %v1820, 1
    %v1825 = vsel %vm1823, %v1824, %v1820
    %v1826 = vadd.s32 %v1821, %v1825
    %v1827 = vadd.s32 %v1826, 536870912
    %v1828 = vshrl.u32 %v1827, 30
    %v1829 = vshll.u32 %v1828, 30
    %v1830 = vsub.s32 %v1826, %v1829
    %vm1831 = vcmp.lt.s32.totalorder %v1830, 0
    %v1832 = vsub.s32 0, %v1830
    %v1833 = vsel %vm1831, %v1832, %v1830
    %v1834 = vclz %v1833
    %v1835 = vsub.s32 %v1834, 2
    %vm1836 = vcmp.gt.s32.totalorder 0, %v1835
    %v1837 = vsel %vm1836, 0, %v1835
    %v1838 = vsub.s32 32, %v1837
    %v1839 = vshll.u32 %v1830, %v1837
    %v1840 = vshrl.u32 %v1822, %v1838
    %v1841 = vor.u32 %v1839, %v1840
    %v1842 = vsub.s32 4294967266, %v1837
    %v1843 = vadd.s32 %v1842, 127
    %v1844 = vshll.u32 %v1843, 23
    %v1845 = vor.u32 4788187, %v1844
    %v1846 = vand.u32 2147483647, %v1845
    %v1848 = vcvt.s32.f32 %v1841
    %v1849 = vmul.f32 %v1848, %v1846
    %v1850 = vxor.u32 %v1849, 2147483648
    %v1851 = vsel %vm1730, %v1850, %v1849
    %v1852 = vsub.s32 4, %v1828
    %v1853 = vsel %vm1730, %v1852, %v1828
    %v1854 = vsel %vm1729, %v949, %v1851
    %v1855 = vsel %vm1729, 0, %v1853
    %v1856 = vmul.f32 %v1854, %v1854
    %v1857 = vmul.f32 %v1856, -0.001358992
    %v1858 = vadd.f32 %v1857, 0.041655596
    %v1859 = vmul.f32 %v1856, %v1858
    %v1860 = vadd.f32 %v1859, -0.4999988
    %v1861 = vmul.f32 %v1856, %v1860
    %v1862 = vadd.f32 1.0, %v1861
    %v1863 = vmul.f32 %v1854, %v1854
    %v1864 = vmul.f32 %v1863, -0.00019511016
    %v1865 = vadd.f32 %v1864, 0.008332121
    %v1866 = vmul.f32 %v1863, %v1865
    %v1867 = vadd.f32 %v1866, -0.16666654
    %v1868 = vmul.f32 %v1863, %v1867
    %v1869 = vadd.f32 %v1868, 1.0
    %v1870 = vmul.f32 %v1869, %v1854
    %vm1871 = vweird.f32 %v949
    %v1872 = vadd.s32 %v1855, 3
    %v1873 = vand.u32 %v1872, 3
    %vm1874 = vcmp.lt.s32.totalorder %v1873, 2
    %vm1875 = vcmp.eq.s32.totalorder %v1873, 0
    %v1876 = vxor.u32 %v1870, 2147483648
    %v1877 = vsel %vm1875, %v1862, %v1876
    %vm1878 = vcmp.eq.s32.totalorder %v1873, 2
    %v1879 = vxor.u32 %v1862, 2147483648
    %v1880 = vsel %vm1878, %v1879, %v1870
    %v1881 = vsel %vm1874, %v1877, %v1880
    %v1882 = vsel %vm1871, nan, %v1881
    %v1883 = vand.u32 2147483647, %v950
    %vm1884 = vcmp.le.f32.partialorder %v1883, 0.7853982
    %vm1885 = vcmp.lt.s32.totalorder %v950, 0
    %v1886 = vand.u32 %v950, 2139095040
    %v1887 = vshrl.u32 %v1886, 23
    %v1888 = vsub.s32 %v1887, 127
    %v1889 = vand.u32 2147483647, %v950
    %v1890 = vand.u32 %v1889, 8388607
    %v1891 = vor.u32 %v1890, 8388608
    %v1892 = vsub.s32 0, %v1891
    %v1893 = vadd.s32 %v1888, 1
    %vm1894 = vcmp.gt.s32.totalorder %v1893, 0
    %v1895 = vsel %vm1894, %v1893, 0
    %v1896 = vshrl.u32 %v1895, 5
    %v1897 = vand.u32 %v1895, 31
    %v1898 = vsub.s32 32, %v1897
    %v1899 = vshrl.u32 683565275, %v1898
    %v1900 = vshll.u32 683565275, %v1897
    %v1901 = vshrl.u32 2475754826, %v1898
    %v1902 = vor.u32 %v1900, %v1901
    %v1903 = vshll.u32 2475754826, %v1897
    %v1904 = vshrl.u32 2131351028, %v1898
    %v1905 = vor.u32 %v1903, %v1904
    %v1906 = vshll.u32 2131351028, %v1897
    %v1907 = vshrl.u32 2102212464, %v1898
    %v1908 = vor.u32 %v1906, %v1907
    %v1909 = vshll.u32 2102212464, %v1897
    %v1910 = vshrl.u32 920167782, %v1898
    %v1911 = vor.u32 %v1909, %v1910
    %v1912 = vshll.u32 920167782, %v1897
    %v1913 = vshrl.u32 1326507024, %v1898
    %v1914 = vor.u32 %v1912, %v1913
    %vm1915 = vcmp.lt.s32.totalorder %v1896, 1
    %vm1916 = vcmp.lt.s32.totalorder %v1896, 2
    %vm1917 = vcmp.lt.s32.totalorder %v1896, 3
    %vm1918 = vcmp.lt.s32.totalorder %v1896, 4
    %v1919 = vsel %vm1915, %v1899, %v1902
    %v1920 = vsel %vm1918, %v1908, 2102212464
    %v1921 = vsel %vm1917, %v1905, %v1920
    %v1922 = vsel %vm1916, %v1919, %v1921
    %v1923 = vsel %vm1915, %v1902, %v1905
    %v1924 = vsel %vm1918, %v1911, 920167782
    %v1925 = vsel %vm1917, %v1908, %v1924
    %v1926 = vsel %vm1916, %v1923, %v1925
    %v1927 = vsel %vm1915, %v1905, %v1908
    %v1928 = vsel %vm1918, %v1914, 1326507024
    %v1929 = vsel %vm1917, %v1911, %v1928
    %v1930 = vsel %vm1916, %v1927, %v1929
    %v1931 = vshll.u32 %v1891, 8
    %v1932 = vand.u32 %v1931, 65535
    %v1933 = vshrl.u32 %v1931, 16
    %v1934 = vand.u32 %v1930, 65535
    %v1935 = vshrl.u32 %v1930, 16
    %v1936 = vmul.u32 %v1932, %v1934
    %v1937 = vmul.u32 %v1932, %v1935
    %v1938 = vmul.u32 %v1933, %v1934
    %v1939 = vmul.u32 %v1933, %v1935
    %v1940 = vshll.u32 %v1937, 16
    %v1941 = vshrl.u32 %v1937, 16
    %v1942 = vshll.u32 %v1938, 16
    %v1943 = vshrl.u32 %v1938, 16
    %vm1944 = vc.u32 %v1936, %v1940
    %v1945 = vsel %vm1944, 1, 0
    %v1946 = vadd.s32 %v1936, %v1940
    %v1947 = vadd.s32 %v1939, %v1945
    %vm1948 = vc.u32 %v1946, %v1942
    %v1949 = vsel %vm1948, 1, 0
    %v1950 = vadd.s32 %v1946, %v1942
    %v1951 = vadd.s32 %v1947, %v1949
    %v1952 = vadd.s32 %v1951, %v1941
    %v1953 = vadd.s32 %v1952, %v1943
    %v1954 = vand.u32 %v1931, 65535
    %v1955 = vshrl.u32 %v1931, 16
    %v1956 = vand.u32 %v1926, 65535
    %v1957 = vshrl.u32 %v1926, 16
    %v1958 = vmul.u32 %v1954, %v1956
    %v1959 = vmul.u32 %v1954, %v1957
    %v1960 = vmul.u32 %v1955, %v1956
    %v1961 = vmul.u32 %v1955, %v1957
    %v1962 = vshll.u32 %v1959, 16
    %v1963 = vshrl.u32 %v1959, 16
    %v1964 = vshll.u32 %v1960, 16
    %v1965 = vshrl.u32 %v1960, 16
    %vm1966 = vc.u32 %v1958, %v1962
    %v1967 = vsel %vm1966, 1, 0
    %v1968 = vadd.s32 %v1958, %v1962
    %v1969 = vadd.s32 %v1961, %v1967
    %vm1970 = vc.u32 %v1968, %v1964
    %v1971 = vsel %vm1970, 1, 0
    %v1972 = vadd.s32 %v1968, %v1964
    %v1973 = vadd.s32 %v1969, %v1971
    %v1974 = vadd.s32 %v1973, %v1963
    %v1975 = vadd.s32 %v1974, %v1965
    %v1976 = vmul.u32 %v1931, %v1922
    %v1977 = vadd.s32 %v1953, %v1972
    %vm1978 = vc.u32 %v1953, %v1972
    %v1979 = vadd.s32 %v1975, 1
    %v1980 = vsel %vm1978, %v1979, %v1975
    %v1981 = vadd.s32 %v1976, %v1980
    %v1982 = vadd.s32 %v1981, 536870912
    %v1983 = vshrl.u32 %v1982, 30
    %v1984 = vshll.u32 %v1983, 30
    %v1985 = vsub.s32 %v1981, %v1984
    %vm1986 = vcmp.lt.s32.totalorder %v1985, 0
    %v1987 = vsub.s32 0, %v1985
    %v1988 = vsel %vm1986, %v1987, %v1985
    %v1989 = vclz %v1988
    %v1990 = vsub.s32 %v1989, 2
    %vm1991 = vcmp.gt.s32.totalorder 0, %v1990
    %v1992 = vsel %vm1991, 0, %v1990
    %v1993 = vsub.s32 32, %v1992
    %v1994 = vshll.u32 %v1985, %v1992
    %v1995 = vshrl.u32 %v1977, %v1993
    %v1996 = vor.u32 %v1994, %v1995
    %v1997 = vsub.s32 4294967266, %v1992
    %v1998 = vadd.s32 %v1997, 127
    %v1999 = vshll.u32 %v1998, 23
    %v2000 = vor.u32 4788187, %v1999
    %v2001 = vand.u32 2147483647, %v2000
    %v2003 = vcvt.s32.f32 %v1996
    %v2004 = vmul.f32 %v2003, %v2001
    %v2005 = vxor.u32 %v2004, 2147483648
    %v2006 = vsel %vm1885, %v2005, %v2004
    %v2007 = vsub.s32 4, %v1983
    %v2008 = vsel %vm1885, %v2007, %v1983
    %v2009 = vsel %vm1884, %v950, %v2006
    %v2010 = vsel %vm1884, 0, %v2008
    %v2011 = vmul.f32 %v2009, %v2009
    %v2012 = vmul.f32 %v2011, -0.001358992
    %v2013 = vadd.f32 %v2012, 0.041655596
    %v2014 = vmul.f32 %v2011, %v2013
    %v2015 = vadd.f32 %v2014, -0.4999988
    %v2016 = vmul.f32 %v2011, %v2015
    %v2017 = vadd.f32 1.0, %v2016
    %v2018 = vmul.f32 %v2009, %v2009
    %v2019 = vmul.f32 %v2018, -0.00019511016
    %v2020 = vadd.f32 %v2019, 0.008332121
    %v2021 = vmul.f32 %v2018, %v2020
    %v2022 = vadd.f32 %v2021, -0.16666654
    %v2023 = vmul.f32 %v2018, %v2022
    %v2024 = vadd.f32 %v2023, 1.0
    %v2025 = vmul.f32 %v2024, %v2009
    %vm2026 = vweird.f32 %v950
    %v2027 = vadd.s32 %v2010, 3
    %v2028 = vand.u32 %v2027, 3
    %vm2029 = vcmp.lt.s32.totalorder %v2028, 2
    %vm2030 = vcmp.eq.s32.totalorder %v2028, 0
    %v2031 = vxor.u32 %v2025, 2147483648
    %v2032 = vsel %vm2030, %v2017, %v2031
    %vm2033 = vcmp.eq.s32.totalorder %v2028, 2
    %v2034 = vxor.u32 %v2017, 2147483648
    %v2035 = vsel %vm2033, %v2034, %v2025
    %v2036 = vsel %vm2029, %v2032, %v2035
    %v2037 = vsel %vm2026, nan, %v2036
    %v2038 = vand.u32 2147483647, %v951
    %vm2039 = vcmp.le.f32.partialorder %v2038, 0.7853982
    %vm2040 = vcmp.lt.s32.totalorder %v951, 0
    %v2041 = vand.u32 %v951, 2139095040
    %v2042 = vshrl.u32 %v2041, 23
    %v2043 = vsub.s32 %v2042, 127
    %v2044 = vand.u32 2147483647, %v951
    %v2045 = vand.u32 %v2044, 8388607
    %v2046 = vor.u32 %v2045, 8388608
    %v2047 = vsub.s32 0, %v2046
    %v2048 = vadd.s32 %v2043, 1
    %vm2049 = vcmp.gt.s32.totalorder %v2048, 0
    %v2050 = vsel %vm2049, %v2048, 0
    %v2051 = vshrl.u32 %v2050, 5
    %v2052 = vand.u32 %v2050, 31
    %v2053 = vsub.s32 32, %v2052
    %v2054 = vshrl.u32 683565275, %v2053
    %v2055 = vshll.u32 683565275, %v2052
    %v2056 = vshrl.u32 2475754826, %v2053
    %v2057 = vor.u32 %v2055, %v2056
    %v2058 = vshll.u32 2475754826, %v2052
    %v2059 = vshrl.u32 2131351028, %v2053
    %v2060 = vor.u32 %v2058, %v2059
    %v2061 = vshll.u32 2131351028, %v2052
    %v2062 = vshrl.u32 2102212464, %v2053
    %v2063 = vor.u32 %v2061, %v2062
    %v2064 = vshll.u32 2102212464, %v2052
    %v2065 = vshrl.u32 920167782, %v2053
    %v2066 = vor.u32 %v2064, %v2065
    %v2067 = vshll.u32 920167782, %v2052
    %v2068 = vshrl.u32 1326507024, %v2053
    %v2069 = vor.u32 %v2067, %v2068
    %vm2070 = vcmp.lt.s32.totalorder %v2051, 1
    %vm2071 = vcmp.lt.s32.totalorder %v2051, 2
    %vm2072 = vcmp.lt.s32.totalorder %v2051, 3
    %vm2073 = vcmp.lt.s32.totalorder %v2051, 4
    %v2074 = vsel %vm2070, %v2054, %v2057
    %v2075 = vsel %vm2073, %v2063, 2102212464
    %v2076 = vsel %vm2072, %v2060, %v2075
    %v2077 = vsel %vm2071, %v2074, %v2076
    %v2078 = vsel %vm2070, %v2057, %v2060
    %v2079 = vsel %vm2073, %v2066, 920167782
    %v2080 = vsel %vm2072, %v2063, %v2079
    %v2081 = vsel %vm2071, %v2078, %v2080
    %v2082 = vsel %vm2070, %v2060, %v2063
    %v2083 = vsel %vm2073, %v2069, 1326507024
    %v2084 = vsel %vm2072, %v2066, %v2083
    %v2085 = vsel %vm2071, %v2082, %v2084
    %v2086 = vshll.u32 %v2046, 8
    %v2087 = vand.u32 %v2086, 65535
    %v2088 = vshrl.u32 %v2086, 16
    %v2089 = vand.u32 %v2085, 65535
    %v2090 = vshrl.u32 %v2085, 16
    %v2091 = vmul.u32 %v2087, %v2089
    %v2092 = vmul.u32 %v2087, %v2090
    %v2093 = vmul.u32 %v2088, %v2089
    %v2094 = vmul.u32 %v2088, %v2090
    %v2095 = vshll.u32 %v2092, 16
    %v2096 = vshrl.u32 %v2092, 16
    %v2097 = vshll.u32 %v2093, 16
    %v2098 = vshrl.u32 %v2093, 16
    %vm2099 = vc.u32 %v2091, %v2095
    %v2100 = vsel %vm2099, 1, 0
    %v2101 = vadd.s32 %v2091, %v2095
    %v2102 = vadd.s32 %v2094, %v2100
    %vm2103 = vc.u32 %v2101, %v2097
    %v2104 = vsel %vm2103, 1, 0
    %v2105 = vadd.s32 %v2101, %v2097
    %v2106 = vadd.s32 %v2102, %v2104
    %v2107 = vadd.s32 %v2106, %v2096
    %v2108 = vadd.s32 %v2107, %v2098
    %v2109 = vand.u32 %v2086, 65535
    %v2110 = vshrl.u32 %v2086, 16
    %v2111 = vand.u32 %v2081, 65535
    %v2112 = vshrl.u32 %v2081, 16
    %v2113 = vmul.u32 %v2109, %v2111
    %v2114 = vmul.u32 %v2109, %v2112
    %v2115 = vmul.u32 %v2110, %v2111
    %v2116 = vmul.u32 %v2110, %v2112
    %v2117 = vshll.u32 %v2114, 16
    %v2118 = vshrl.u32 %v2114, 16
    %v2119 = vshll.u32 %v2115, 16
    %v2120 = vshrl.u32 %v2115, 16
    %vm2121 = vc.u32 %v2113, %v2117
    %v2122 = vsel %vm2121, 1, 0
    %v2123 = vadd.s32 %v2113, %v2117
    %v2124 = vadd.s32 %v2116, %v2122
    %vm2125 = vc.u32 %v2123, %v2119
    %v2126 = vsel %vm2125, 1, 0
    %v2127 = vadd.s32 %v2123, %v2119
    %v2128 = vadd.s32 %v2124, %v2126
    %v2129 = vadd.s32 %v2128, %v2118
    %v2130 = vadd.s32 %v2129, %v2120
    %v2131 = vmul.u32 %v2086, %v2077
    %v2132 = vadd.s32 %v2108, %v2127
    %vm2133 = vc.u32 %v2108, %v2127
    %v2134 = vadd.s32 %v2130, 1
    %v2135 = vsel %vm2133, %v2134, %v2130
    %v2136 = vadd.s32 %v2131, %v2135
    %v2137 = vadd.s32 %v2136, 536870912
    %v2138 = vshrl.u32 %v2137, 30
    %v2139 = vshll.u32 %v2138, 30
    %v2140 = vsub.s32 %v2136, %v2139
    %vm2141 = vcmp.lt.s32.totalorder %v2140, 0
    %v2142 = vsub.s32 0, %v2140
    %v2143 = vsel %vm2141, %v2142, %v2140
    %v2144 = vclz %v2143
    %v2145 = vsub.s32 %v2144, 2
    %vm2146 = vcmp.gt.s32.totalorder 0, %v2145
    %v2147 = vsel %vm2146, 0, %v2145
    %v2148 = vsub.s32 32, %v2147
    %v2149 = vshll.u32 %v2140, %v2147
    %v2150 = vshrl.u32 %v2132, %v2148
    %v2151 = vor.u32 %v2149, %v2150
    %v2152 = vsub.s32 4294967266, %v2147
    %v2153 = vadd.s32 %v2152, 127
    %v2154 = vshll.u32 %v2153, 23
    %v2155 = vor.u32 4788187, %v2154
    %v2156 = vand.u32 2147483647, %v2155
    %v2158 = vcvt.s32.f32 %v2151
    %v2159 = vmul.f32 %v2158, %v2156
    %v2160 = vxor.u32 %v2159, 2147483648
    %v2161 = vsel %vm2040, %v2160, %v2159
    %v2162 = vsub.s32 4, %v2138
    %v2163 = vsel %vm2040, %v2162, %v2138
    %v2164 = vsel %vm2039, %v951, %v2161
    %v2165 = vsel %vm2039, 0, %v2163
    %v2166 = vmul.f32 %v2164, %v2164
    %v2167 = vmul.f32 %v2166, -0.001358992
    %v2168 = vadd.f32 %v2167, 0.041655596
    %v2169 = vmul.f32 %v2166, %v2168
    %v2170 = vadd.f32 %v2169, -0.4999988
    %v2171 = vmul.f32 %v2166, %v2170
    %v2172 = vadd.f32 1.0, %v2171
    %v2173 = vmul.f32 %v2164, %v2164
    %v2174 = vmul.f32 %v2173, -0.00019511016
    %v2175 = vadd.f32 %v2174, 0.008332121
    %v2176 = vmul.f32 %v2173, %v2175
    %v2177 = vadd.f32 %v2176, -0.16666654
    %v2178 = vmul.f32 %v2173, %v2177
    %v2179 = vadd.f32 %v2178, 1.0
    %v2180 = vmul.f32 %v2179, %v2164
    %vm2181 = vweird.f32 %v951
    %v2182 = vadd.s32 %v2165, 3
    %v2183 = vand.u32 %v2182, 3
    %vm2184 = vcmp.lt.s32.totalorder %v2183, 2
    %vm2185 = vcmp.eq.s32.totalorder %v2183, 0
    %v2186 = vxor.u32 %v2180, 2147483648
    %v2187 = vsel %vm2185, %v2172, %v2186
    %vm2188 = vcmp.eq.s32.totalorder %v2183, 2
    %v2189 = vxor.u32 %v2172, 2147483648
    %v2190 = vsel %vm2188, %v2189, %v2180
    %v2191 = vsel %vm2184, %v2187, %v2190
    %v2192 = vsel %vm2181, nan, %v2191
    %v2193 = vand.u32 2147483647, %v952
    %vm2194 = vcmp.le.f32.partialorder %v2193, 0.7853982
    %vm2195 = vcmp.lt.s32.totalorder %v952, 0
    %v2196 = vand.u32 %v952, 2139095040
    %v2197 = vshrl.u32 %v2196, 23
    %v2198 = vsub.s32 %v2197, 127
    %v2199 = vand.u32 2147483647, %v952
    %v2200 = vand.u32 %v2199, 8388607
    %v2201 = vor.u32 %v2200, 8388608
    %v2202 = vsub.s32 0, %v2201
    %v2203 = vadd.s32 %v2198, 1
    %vm2204 = vcmp.gt.s32.totalorder %v2203, 0
    %v2205 = vsel %vm2204, %v2203, 0
    %v2206 = vshrl.u32 %v2205, 5
    %v2207 = vand.u32 %v2205, 31
    %v2208 = vsub.s32 32, %v2207
    %v2209 = vshrl.u32 683565275, %v2208
    %v2210 = vshll.u32 683565275, %v2207
    %v2211 = vshrl.u32 2475754826, %v2208
    %v2212 = vor.u32 %v2210, %v2211
    %v2213 = vshll.u32 2475754826, %v2207
    %v2214 = vshrl.u32 2131351028, %v2208
    %v2215 = vor.u32 %v2213, %v2214
    %v2216 = vshll.u32 2131351028, %v2207
    %v2217 = vshrl.u32 2102212464, %v2208
    %v2218 = vor.u32 %v2216, %v2217
    %v2219 = vshll.u32 2102212464, %v2207
    %v2220 = vshrl.u32 920167782, %v2208
    %v2221 = vor.u32 %v2219, %v2220
    %v2222 = vshll.u32 920167782, %v2207
    %v2223 = vshrl.u32 1326507024, %v2208
    %v2224 = vor.u32 %v2222, %v2223
    %vm2225 = vcmp.lt.s32.totalorder %v2206, 1
    %vm2226 = vcmp.lt.s32.totalorder %v2206, 2
    %vm2227 = vcmp.lt.s32.totalorder %v2206, 3
    %vm2228 = vcmp.lt.s32.totalorder %v2206, 4
    %v2229 = vsel %vm2225, %v2209, %v2212
    %v2230 = vsel %vm2228, %v2218, 2102212464
    %v2231 = vsel %vm2227, %v2215, %v2230
    %v2232 = vsel %vm2226, %v2229, %v2231
    %v2233 = vsel %vm2225, %v2212, %v2215
    %v2234 = vsel %vm2228, %v2221, 920167782
    %v2235 = vsel %vm2227, %v2218, %v2234
    %v2236 = vsel %vm2226, %v2233, %v2235
    %v2237 = vsel %vm2225, %v2215, %v2218
    %v2238 = vsel %vm2228, %v2224, 1326507024
    %v2239 = vsel %vm2227, %v2221, %v2238
    %v2240 = vsel %vm2226, %v2237, %v2239
    %v2241 = vshll.u32 %v2201, 8
    %v2242 = vand.u32 %v2241, 65535
    %v2243 = vshrl.u32 %v2241, 16
    %v2244 = vand.u32 %v2240, 65535
    %v2245 = vshrl.u32 %v2240, 16
    %v2246 = vmul.u32 %v2242, %v2244
    %v2247 = vmul.u32 %v2242, %v2245
    %v2248 = vmul.u32 %v2243, %v2244
    %v2249 = vmul.u32 %v2243, %v2245
    %v2250 = vshll.u32 %v2247, 16
    %v2251 = vshrl.u32 %v2247, 16
    %v2252 = vshll.u32 %v2248, 16
    %v2253 = vshrl.u32 %v2248, 16
    %vm2254 = vc.u32 %v2246, %v2250
    %v2255 = vsel %vm2254, 1, 0
    %v2256 = vadd.s32 %v2246, %v2250
    %v2257 = vadd.s32 %v2249, %v2255
    %vm2258 = vc.u32 %v2256, %v2252
    %v2259 = vsel %vm2258, 1, 0
    %v2260 = vadd.s32 %v2256, %v2252
    %v2261 = vadd.s32 %v2257, %v2259
    %v2262 = vadd.s32 %v2261, %v2251
    %v2263 = vadd.s32 %v2262, %v2253
    %v2264 = vand.u32 %v2241, 65535
    %v2265 = vshrl.u32 %v2241, 16
    %v2266 = vand.u32 %v2236, 65535
    %v2267 = vshrl.u32 %v2236, 16
    %v2268 = vmul.u32 %v2264, %v2266
    %v2269 = vmul.u32 %v2264, %v2267
    %v2270 = vmul.u32 %v2265, %v2266
    %v2271 = vmul.u32 %v2265, %v2267
    %v2272 = vshll.u32 %v2269, 16
    %v2273 = vshrl.u32 %v2269, 16
    %v2274 = vshll.u32 %v2270, 16
    %v2275 = vshrl.u32 %v2270, 16
    %vm2276 = vc.u32 %v2268, %v2272
    %v2277 = vsel %vm2276, 1, 0
    %v2278 = vadd.s32 %v2268, %v2272
    %v2279 = vadd.s32 %v2271, %v2277
    %vm2280 = vc.u32 %v2278, %v2274
    %v2281 = vsel %vm2280, 1, 0
    %v2282 = vadd.s32 %v2278, %v2274
    %v2283 = vadd.s32 %v2279, %v2281
    %v2284 = vadd.s32 %v2283, %v2273
    %v2285 = vadd.s32 %v2284, %v2275
    %v2286 = vmul.u32 %v2241, %v2232
    %v2287 = vadd.s32 %v2263, %v2282
    %vm2288 = vc.u32 %v2263, %v2282
    %v2289 = vadd.s32 %v2285, 1
    %v2290 = vsel %vm2288, %v2289, %v2285
    %v2291 = vadd.s32 %v2286, %v2290
    %v2292 = vadd.s32 %v2291, 536870912
    %v2293 = vshrl.u32 %v2292, 30
    %v2294 = vshll.u32 %v2293, 30
    %v2295 = vsub.s32 %v2291, %v2294
    %vm2296 = vcmp.lt.s32.totalorder %v2295, 0
    %v2297 = vsub.s32 0, %v2295
    %v2298 = vsel %vm2296, %v2297, %v2295
    %v2299 = vclz %v2298
    %v2300 = vsub.s32 %v2299, 2
    %vm2301 = vcmp.gt.s32.totalorder 0, %v2300
    %v2302 = vsel %vm2301, 0, %v2300
    %v2303 = vsub.s32 32, %v2302
    %v2304 = vshll.u32 %v2295, %v2302
    %v2305 = vshrl.u32 %v2287, %v2303
    %v2306 = vor.u32 %v2304, %v2305
    %v2307 = vsub.s32 4294967266, %v2302
    %v2308 = vadd.s32 %v2307, 127
    %v2309 = vshll.u32 %v2308, 23
    %v2310 = vor.u32 4788187, %v2309
    %v2311 = vand.u32 2147483647, %v2310
    %v2313 = vcvt.s32.f32 %v2306
    %v2314 = vmul.f32 %v2313, %v2311
    %v2315 = vxor.u32 %v2314, 2147483648
    %v2316 = vsel %vm2195, %v2315, %v2314
    %v2317 = vsub.s32 4, %v2293
    %v2318 = vsel %vm2195, %v2317, %v2293
    %v2319 = vsel %vm2194, %v952, %v2316
    %v2320 = vsel %vm2194, 0, %v2318
    %v2321 = vmul.f32 %v2319, %v2319
    %v2322 = vmul.f32 %v2321, -0.001358992
    %v2323 = vadd.f32 %v2322, 0.041655596
    %v2324 = vmul.f32 %v2321, %v2323
    %v2325 = vadd.f32 %v2324, -0.4999988
    %v2326 = vmul.f32 %v2321, %v2325
    %v2327 = vadd.f32 1.0, %v2326
    %v2328 = vmul.f32 %v2319, %v2319
    %v2329 = vmul.f32 %v2328, -0.00019511016
    %v2330 = vadd.f32 %v2329, 0.008332121
    %v2331 = vmul.f32 %v2328, %v2330
    %v2332 = vadd.f32 %v2331, -0.16666654
    %v2333 = vmul.f32 %v2328, %v2332
    %v2334 = vadd.f32 %v2333, 1.0
    %v2335 = vmul.f32 %v2334, %v2319
    %vm2336 = vweird.f32 %v952
    %v2337 = vadd.s32 %v2320, 3
    %v2338 = vand.u32 %v2337, 3
    %vm2339 = vcmp.lt.s32.totalorder %v2338, 2
    %vm2340 = vcmp.eq.s32.totalorder %v2338, 0
    %v2341 = vxor.u32 %v2335, 2147483648
    %v2342 = vsel %vm2340, %v2327, %v2341
    %vm2343 = vcmp.eq.s32.totalorder %v2338, 2
    %v2344 = vxor.u32 %v2327, 2147483648
    %v2345 = vsel %vm2343, %v2344, %v2335
    %v2346 = vsel %vm2339, %v2342, %v2345
    %v2347 = vsel %vm2336, nan, %v2346
    %v2348 = vlaneseq
    %v2349 = vand.u32 %v2348, 127
    %v2350 = vadd.s32 %v2349, 128
    %v2351 = vadd.s32 %v2349, 256
    %v2352 = vadd.s32 %v2349, 384
    %v2353 = vadd.s32 %v2349, 512
    %v2354 = vadd.s32 %v2349, 640
    %v2355 = vadd.s32 %v2349, 768
    %v2356 = vadd.s32 %v2349, 896
    %v2357 = vadd.s32 %v2349, 1024
    %vm2358 = vcmp.lt.s32.totalorder %v2349, 0
    %v2359 = vsub.s32 0, %v2349
    %v2360 = vsel %vm2358, %v2359, %v2349
    %v2361 = vand.u32 %v2360, 65535
    %v2362 = vshrl.u32 %v2360, 16
    %v2364 = vmul.u32 %v2361, 14564
    %v2365 = vmul.u32 %v2361, 58254
    %v2366 = vmul.u32 %v2362, 14564
    %v2367 = vmul.u32 %v2362, 58254
    %v2368 = vshll.u32 %v2365, 16
    %v2369 = vshrl.u32 %v2365, 16
    %v2370 = vshll.u32 %v2366, 16
    %v2371 = vshrl.u32 %v2366, 16
    %vm2372 = vc.u32 %v2364, %v2368
    %v2373 = vsel %vm2372, 1, 0
    %v2374 = vadd.s32 %v2364, %v2368
    %v2375 = vadd.s32 %v2367, %v2373
    %vm2376 = vc.u32 %v2374, %v2370
    %v2377 = vsel %vm2376, 1, 0
    %v2378 = vadd.s32 %v2374, %v2370
    %v2379 = vadd.s32 %v2375, %v2377
    %v2380 = vadd.s32 %v2379, %v2369
    %v2381 = vadd.s32 %v2380, %v2371
    %v2382 = vshrl.u32 %v2381, 5
    %v2383 = vmul.u32 %v2382, 36
    %v2384 = vsub.s32 %v2360, %v2383
    %v2385 = vsub.s32 0, %v2384
    %v2386 = vsel %vm2358, %v2385, %v2384
    %vm2387 = vcmp.lt.s32.totalorder %v2350, 0
    %v2388 = vsub.s32 0, %v2350
    %v2389 = vsel %vm2387, %v2388, %v2350
    %v2390 = vand.u32 %v2389, 65535
    %v2391 = vshrl.u32 %v2389, 16
    %v2393 = vmul.u32 %v2390, 14564
    %v2394 = vmul.u32 %v2390, 58254
    %v2395 = vmul.u32 %v2391, 14564
    %v2396 = vmul.u32 %v2391, 58254
    %v2397 = vshll.u32 %v2394, 16
    %v2398 = vshrl.u32 %v2394, 16
    %v2399 = vshll.u32 %v2395, 16
    %v2400 = vshrl.u32 %v2395, 16
    %vm2401 = vc.u32 %v2393, %v2397
    %v2402 = vsel %vm2401, 1, 0
    %v2403 = vadd.s32 %v2393, %v2397
    %v2404 = vadd.s32 %v2396, %v2402
    %vm2405 = vc.u32 %v2403, %v2399
    %v2406 = vsel %vm2405, 1, 0
    %v2407 = vadd.s32 %v2403, %v2399
    %v2408 = vadd.s32 %v2404, %v2406
    %v2409 = vadd.s32 %v2408, %v2398
    %v2410 = vadd.s32 %v2409, %v2400
    %v2411 = vshrl.u32 %v2410, 5
    %v2412 = vmul.u32 %v2411, 36
    %v2413 = vsub.s32 %v2389, %v2412
    %v2414 = vsub.s32 0, %v2413
    %v2415 = vsel %vm2387, %v2414, %v2413
    %vm2416 = vcmp.lt.s32.totalorder %v2351, 0
    %v2417 = vsub.s32 0, %v2351
    %v2418 = vsel %vm2416, %v2417, %v2351
    %v2419 = vand.u32 %v2418, 65535
    %v2420 = vshrl.u32 %v2418, 16
    %v2422 = vmul.u32 %v2419, 14564
    %v2423 = vmul.u32 %v2419, 58254
    %v2424 = vmul.u32 %v2420, 14564
    %v2425 = vmul.u32 %v2420, 58254
    %v2426 = vshll.u32 %v2423, 16
    %v2427 = vshrl.u32 %v2423, 16
    %v2428 = vshll.u32 %v2424, 16
    %v2429 = vshrl.u32 %v2424, 16
    %vm2430 = vc.u32 %v2422, %v2426
    %v2431 = vsel %vm2430, 1, 0
    %v2432 = vadd.s32 %v2422, %v2426
    %v2433 = vadd.s32 %v2425, %v2431
    %vm2434 = vc.u32 %v2432, %v2428
    %v2435 = vsel %vm2434, 1, 0
    %v2436 = vadd.s32 %v2432, %v2428
    %v2437 = vadd.s32 %v2433, %v2435
    %v2438 = vadd.s32 %v2437, %v2427
    %v2439 = vadd.s32 %v2438, %v2429
    %v2440 = vshrl.u32 %v2439, 5
    %v2441 = vmul.u32 %v2440, 36
    %v2442 = vsub.s32 %v2418, %v2441
    %v2443 = vsub.s32 0, %v2442
    %v2444 = vsel %vm2416, %v2443, %v2442
    %vm2445 = vcmp.lt.s32.totalorder %v2352, 0
    %v2446 = vsub.s32 0, %v2352
    %v2447 = vsel %vm2445, %v2446, %v2352
    %v2448 = vand.u32 %v2447, 65535
    %v2449 = vshrl.u32 %v2447, 16
    %v2451 = vmul.u32 %v2448, 14564
    %v2452 = vmul.u32 %v2448, 58254
    %v2453 = vmul.u32 %v2449, 14564
    %v2454 = vmul.u32 %v2449, 58254
    %v2455 = vshll.u32 %v2452, 16
    %v2456 = vshrl.u32 %v2452, 16
    %v2457 = vshll.u32 %v2453, 16
    %v2458 = vshrl.u32 %v2453, 16
    %vm2459 = vc.u32 %v2451, %v2455
    %v2460 = vsel %vm2459, 1, 0
    %v2461 = vadd.s32 %v2451, %v2455
    %v2462 = vadd.s32 %v2454, %v2460
    %vm2463 = vc.u32 %v2461, %v2457
    %v2464 = vsel %vm2463, 1, 0
    %v2465 = vadd.s32 %v2461, %v2457
    %v2466 = vadd.s32 %v2462, %v2464
    %v2467 = vadd.s32 %v2466, %v2456
    %v2468 = vadd.s32 %v2467, %v2458
    %v2469 = vshrl.u32 %v2468, 5
    %v2470 = vmul.u32 %v2469, 36
    %v2471 = vsub.s32 %v2447, %v2470
    %v2472 = vsub.s32 0, %v2471
    %v2473 = vsel %vm2445, %v2472, %v2471
    %vm2474 = vcmp.lt.s32.totalorder %v2353, 0
    %v2475 = vsub.s32 0, %v2353
    %v2476 = vsel %vm2474, %v2475, %v2353
    %v2477 = vand.u32 %v2476, 65535
    %v2478 = vshrl.u32 %v2476, 16
    %v2480 = vmul.u32 %v2477, 14564
    %v2481 = vmul.u32 %v2477, 58254
    %v2482 = vmul.u32 %v2478, 14564
    %v2483 = vmul.u32 %v2478, 58254
    %v2484 = vshll.u32 %v2481, 16
    %v2485 = vshrl.u32 %v2481, 16
    %v2486 = vshll.u32 %v2482, 16
    %v2487 = vshrl.u32 %v2482, 16
    %vm2488 = vc.u32 %v2480, %v2484
    %v2489 = vsel %vm2488, 1, 0
    %v2490 = vadd.s32 %v2480, %v2484
    %v2491 = vadd.s32 %v2483, %v2489
    %vm2492 = vc.u32 %v2490, %v2486
    %v2493 = vsel %vm2492, 1, 0
    %v2494 = vadd.s32 %v2490, %v2486
    %v2495 = vadd.s32 %v2491, %v2493
    %v2496 = vadd.s32 %v2495, %v2485
    %v2497 = vadd.s32 %v2496, %v2487
    %v2498 = vshrl.u32 %v2497, 5
    %v2499 = vmul.u32 %v2498, 36
    %v2500 = vsub.s32 %v2476, %v2499
    %v2501 = vsub.s32 0, %v2500
    %v2502 = vsel %vm2474, %v2501, %v2500
    %vm2503 = vcmp.lt.s32.totalorder %v2354, 0
    %v2504 = vsub.s32 0, %v2354
    %v2505 = vsel %vm2503, %v2504, %v2354
    %v2506 = vand.u32 %v2505, 65535
    %v2507 = vshrl.u32 %v2505, 16
    %v2509 = vmul.u32 %v2506, 14564
    %v2510 = vmul.u32 %v2506, 58254
    %v2511 = vmul.u32 %v2507, 14564
    %v2512 = vmul.u32 %v2507, 58254
    %v2513 = vshll.u32 %v2510, 16
    %v2514 = vshrl.u32 %v2510, 16
    %v2515 = vshll.u32 %v2511, 16
    %v2516 = vshrl.u32 %v2511, 16
    %vm2517 = vc.u32 %v2509, %v2513
    %v2518 = vsel %vm2517, 1, 0
    %v2519 = vadd.s32 %v2509, %v2513
    %v2520 = vadd.s32 %v2512, %v2518
    %vm2521 = vc.u32 %v2519, %v2515
    %v2522 = vsel %vm2521, 1, 0
    %v2523 = vadd.s32 %v2519, %v2515
    %v2524 = vadd.s32 %v2520, %v2522
    %v2525 = vadd.s32 %v2524, %v2514
    %v2526 = vadd.s32 %v2525, %v2516
    %v2527 = vshrl.u32 %v2526, 5
    %v2528 = vmul.u32 %v2527, 36
    %v2529 = vsub.s32 %v2505, %v2528
    %v2530 = vsub.s32 0, %v2529
    %v2531 = vsel %vm2503, %v2530, %v2529
    %vm2532 = vcmp.lt.s32.totalorder %v2355, 0
    %v2533 = vsub.s32 0, %v2355
    %v2534 = vsel %vm2532, %v2533, %v2355
    %v2535 = vand.u32 %v2534, 65535
    %v2536 = vshrl.u32 %v2534, 16
    %v2538 = vmul.u32 %v2535, 14564
    %v2539 = vmul.u32 %v2535, 58254
    %v2540 = vmul.u32 %v2536, 14564
    %v2541 = vmul.u32 %v2536, 58254
    %v2542 = vshll.u32 %v2539, 16
    %v2543 = vshrl.u32 %v2539, 16
    %v2544 = vshll.u32 %v2540, 16
    %v2545 = vshrl.u32 %v2540, 16
    %vm2546 = vc.u32 %v2538, %v2542
    %v2547 = vsel %vm2546, 1, 0
    %v2548 = vadd.s32 %v2538, %v2542
    %v2549 = vadd.s32 %v2541, %v2547
    %vm2550 = vc.u32 %v2548, %v2544
    %v2551 = vsel %vm2550, 1, 0
    %v2552 = vadd.s32 %v2548, %v2544
    %v2553 = vadd.s32 %v2549, %v2551
    %v2554 = vadd.s32 %v2553, %v2543
    %v2555 = vadd.s32 %v2554, %v2545
    %v2556 = vshrl.u32 %v2555, 5
    %v2557 = vmul.u32 %v2556, 36
    %v2558 = vsub.s32 %v2534, %v2557
    %v2559 = vsub.s32 0, %v2558
    %v2560 = vsel %vm2532, %v2559, %v2558
    %vm2561 = vcmp.lt.s32.totalorder %v2356, 0
    %v2562 = vsub.s32 0, %v2356
    %v2563 = vsel %vm2561, %v2562, %v2356
    %v2564 = vand.u32 %v2563, 65535
    %v2565 = vshrl.u32 %v2563, 16
    %v2567 = vmul.u32 %v2564, 14564
    %v2568 = vmul.u32 %v2564, 58254
    %v2569 = vmul.u32 %v2565, 14564
    %v2570 = vmul.u32 %v2565, 58254
    %v2571 = vshll.u32 %v2568, 16
    %v2572 = vshrl.u32 %v2568, 16
    %v2573 = vshll.u32 %v2569, 16
    %v2574 = vshrl.u32 %v2569, 16
    %vm2575 = vc.u32 %v2567, %v2571
    %v2576 = vsel %vm2575, 1, 0
    %v2577 = vadd.s32 %v2567, %v2571
    %v2578 = vadd.s32 %v2570, %v2576
    %vm2579 = vc.u32 %v2577, %v2573
    %v2580 = vsel %vm2579, 1, 0
    %v2581 = vadd.s32 %v2577, %v2573
    %v2582 = vadd.s32 %v2578, %v2580
    %v2583 = vadd.s32 %v2582, %v2572
    %v2584 = vadd.s32 %v2583, %v2574
    %v2585 = vshrl.u32 %v2584, 5
    %v2586 = vmul.u32 %v2585, 36
    %v2587 = vsub.s32 %v2563, %v2586
    %v2588 = vsub.s32 0, %v2587
    %v2589 = vsel %vm2561, %v2588, %v2587
    %vm2590 = vcmp.lt.s32.totalorder %v2357, 0
    %v2591 = vsub.s32 0, %v2357
    %v2592 = vsel %vm2590, %v2591, %v2357
    %v2593 = vand.u32 %v2592, 65535
    %v2594 = vshrl.u32 %v2592, 16
    %v2596 = vmul.u32 %v2593, 14564
    %v2597 = vmul.u32 %v2593, 58254
    %v2598 = vmul.u32 %v2594, 14564
    %v2599 = vmul.u32 %v2594, 58254
    %v2600 = vshll.u32 %v2597, 16
    %v2601 = vshrl.u32 %v2597, 16
    %v2602 = vshll.u32 %v2598, 16
    %v2603 = vshrl.u32 %v2598, 16
    %vm2604 = vc.u32 %v2596, %v2600
    %v2605 = vsel %vm2604, 1, 0
    %v2606 = vadd.s32 %v2596, %v2600
    %v2607 = vadd.s32 %v2599, %v2605
    %vm2608 = vc.u32 %v2606, %v2602
    %v2609 = vsel %vm2608, 1, 0
    %v2610 = vadd.s32 %v2606, %v2602
    %v2611 = vadd.s32 %v2607, %v2609
    %v2612 = vadd.s32 %v2611, %v2601
    %v2613 = vadd.s32 %v2612, %v2603
    %v2614 = vshrl.u32 %v2613, 5
    %v2615 = vmul.u32 %v2614, 36
    %v2616 = vsub.s32 %v2592, %v2615
    %v2617 = vsub.s32 0, %v2616
    %v2618 = vsel %vm2590, %v2617, %v2616
    %vm2619 = vcmp.ne.s32.totalorder %v2386, 0
    %vm2620 = vcmp.ne.s32.totalorder %v2415, 0
    %vm2621 = vcmp.ne.s32.totalorder %v2444, 0
    %vm2622 = vcmp.ne.s32.totalorder %v2473, 0
    %vm2623 = vcmp.ne.s32.totalorder %v2502, 0
    %vm2624 = vcmp.ne.s32.totalorder %v2531, 0
    %vm2625 = vcmp.ne.s32.totalorder %v2560, 0
    %vm2626 = vcmp.ne.s32.totalorder %v2589, 0
    %vm2627 = vcmp.ne.s32.totalorder %v2618, 0
    %vm2628 = vcmp.lt.s32.totalorder %v2386, 0
    %vm2629 = vcmp.lt.s32.totalorder %v2415, 0
    %vm2630 = vcmp.lt.s32.totalorder %v2444, 0
    %vm2631 = vcmp.lt.s32.totalorder %v2473, 0
    %vm2632 = vcmp.lt.s32.totalorder %v2502, 0
    %vm2633 = vcmp.lt.s32.totalorder %v2531, 0
    %vm2634 = vcmp.lt.s32.totalorder %v2560, 0
    %vm2635 = vcmp.lt.s32.totalorder %v2589, 0
    %vm2636 = vcmp.lt.s32.totalorder %v2618, 0
    %vm2637 = vmand %vm2628, %vm2619
    %vm2638 = vmand %vm2629, %vm2620
    %vm2639 = vmand %vm2630, %vm2621
    %vm2640 = vmand %vm2631, %vm2622
    %vm2641 = vmand %vm2632, %vm2623
    %vm2642 = vmand %vm2633, %vm2624
    %vm2643 = vmand %vm2634, %vm2625
    %vm2644 = vmand %vm2635, %vm2626
    %vm2645 = vmand %vm2636, %vm2627
    %v2646 = vadd.s32 %v2386, 36
    %v2647 = vadd.s32 %v2415, 36
    %v2648 = vadd.s32 %v2444, 36
    %v2649 = vadd.s32 %v2473, 36
    %v2650 = vadd.s32 %v2502, 36
    %v2651 = vadd.s32 %v2531, 36
    %v2652 = vadd.s32 %v2560, 36
    %v2653 = vadd.s32 %v2589, 36
    %v2654 = vadd.s32 %v2618, 36
    %v2655 = vsel %vm2637, %v2646, %v2386
    %v2656 = vsel %vm2638, %v2647, %v2415
    %v2657 = vsel %vm2639, %v2648, %v2444
    %v2658 = vsel %vm2640, %v2649, %v2473
    %v2659 = vsel %vm2641, %v2650, %v2502
    %v2660 = vsel %vm2642, %v2651, %v2531
    %v2661 = vsel %vm2643, %v2652, %v2560
    %v2662 = vsel %vm2644, %v2653, %v2589
    %v2663 = vsel %vm2645, %v2654, %v2618
    %vm2664 = vcmp.lt.s32.totalorder %v2655, 4
    %vm2665 = vcmp.lt.s32.totalorder %v2656, 4
    %vm2666 = vcmp.lt.s32.totalorder %v2657, 4
    %vm2667 = vcmp.lt.s32.totalorder %v2658, 4
    %vm2668 = vcmp.lt.s32.totalorder %v2659, 4
    %vm2669 = vcmp.lt.s32.totalorder %v2660, 4
    %vm2670 = vcmp.lt.s32.totalorder %v2661, 4
    %vm2671 = vcmp.lt.s32.totalorder %v2662, 4
    %vm2672 = vcmp.lt.s32.totalorder %v2663, 4
    %v2673 = vsel %vm2664, %v944, %v1107
    %v2674 = vsel %vm2665, %v945, %v1262
    %v2675 = vsel %vm2666, %v946, %v1417
    %v2676 = vsel %vm2667, %v947, %v1572
    %v2677 = vsel %vm2668, %v948, %v1727
    %v2678 = vsel %vm2669, %v949, %v1882
    %v2679 = vsel %vm2670, %v950, %v2037
    %v2680 = vsel %vm2671, %v951, %v2192
    %v2681 = vsel %vm2672, %v952, %v2347
    %v2690 = vrot.slane %v2674, 7
    %v2691 = vrot.slane %v2675, 6
    %v2692 = vrot.slane %v2676, 5
    %v2693 = vrot.slane %v2677, 4
    %v2694 = vrot.slane %v2678, 3
    %v2695 = vrot.slane %v2679, 2
    %v2696 = vrot.slane %v2680, 1
    %vm2697 = vcmask 1040384
    %v2698 = vsel %vm2697, %v2673, %v2690
    %vm2699 = vcmask 1042434
    %v2700 = vsel %vm2699, %v2691, %v2692
    %vm2701 = vcmask 1041408
    %v2702 = vsel %vm2701, %v2698, %v2700
    %vm2703 = vcmask 1044484
    %v2704 = vsel %vm2703, %v2693, %v2694
    %vm2705 = vcmask 1046534
    %v2706 = vsel %vm2705, %v2695, %v2696
    %vm2707 = vcmask 1045508
    %v2708 = vsel %vm2707, %v2704, %v2706
    %vm2709 = vcmask 1043456
    %v2710 = vsel %vm2709, %v2702, %v2708
    %2712 = vst [vmem:[#allocation10] sm:$0xff] %v2710
    %v2713 = vlaneseq
    %vm2714 = vcmp.ge.s32.totalorder %v2713, 0
    %vm2715 = vcmp.lt.s32.totalorder %v2713, 128
    %vm2716 = vmand %vm2714, %vm2715
    %2717 = vst.msk [vmem:[#allocation10 + $0x8] sm:$0x1] %vm2716, %v2681
    // Predicated region
    $region34: #{tpu_custom_call.1} parent=1 // pred_check
      _
    $region35: #{tpu_custom_call.1} parent=1 // pred_check_branch
      %2719 = sbr.rel (0) target = $region37
    $region36: #{tpu_custom_call.1} parent=1 // pred_region
      %2721 = vsyncadd [#allocation4], 0
      %s2723 = sshll.u32 [#allocation10], 4
      %s2724 = int_to_ptr.vmem [resolvable:$true] %s2723
      %s2725 = sshll.u32 %s4, 4
      %s2726 = int_to_ptr.hbm [resolvable:$true] %s2725
      %2728 = dma.vmem_to_hbm [thread:$0]  %s2724, 144, %s2726, [#allocation4]
    $region37: #{tpu_custom_call.1} parent=1 // pred_fallthru
      _
    // Predicated region
    $region38: #{tpu_custom_call.1} parent=1 // pred_check
      _
    $region39: #{tpu_custom_call.1} parent=1 // pred_check_branch
      %2730 = sbr.rel (0) target = $region41
    $region40: #{tpu_custom_call.1} parent=1 // pred_region
      %2732 = dma.done [#allocation4], 144
    $region41: #{tpu_custom_call.1} parent=1 // pred_fallthru
      _
    %2733 = vsyncpa [#allocation3], 1
    %2734 = vsyncpa [#allocation6], 1
    %2735 = vsyncpa [#allocation9], 1
    %2736 = vsyncpa [#allocation4], 1

</llo_original>
